<compile_context>
chip_gen: v6e
topology: v6e:2x2x1
jax: 0.10.0
libtpu: 0.0.40
codegen_flags: <defaults>
</compile_context>

<pallas_src>
import functools
import math

import jax
import jax.numpy as jnp
from jax.experimental import pallas as pl
from jax.experimental.pallas import tpu as pltpu

EMBED_DIM = 32
LN_EPS = 1e-5


def _round_up(x, m):
  return ((x + m - 1) // m) * m


# ----------------------------------------------------------------------------
# Fused kernel: one grid step == Bt batch elements.
# ----------------------------------------------------------------------------
def _fused_kernel(src_ref, tgt_ref, tab_ref, logits_ref, stats_ref, *,
                  bt, lsrc, lsrc_pad, t_pad, nv, n_sptk, sptk_pad, pad_id,
                  scale, eps, off_coord, off_pos, k_src, off_ip, off_op,
                  k_tgt, wsp_off, norm_off):
  f32 = jnp.float32

  def mm(a, b):  # 2-D MXU matmul, f32 accumulate
    return jnp.dot(a, b, preferred_element_type=f32)

  def layer_norm(x, g, b):
    mu = jnp.mean(x, axis=-1, keepdims=True)
    var = jnp.mean((x - mu) ** 2, axis=-1, keepdims=True)
    return (x - mu) * jax.lax.rsqrt(var + eps) * g + b

  # ---- single fused parameter table (one constant DMA), static row slices ----
  tab = tab_ref[...]
  src_tab = tab[0:k_src, :]
  tgt_tab = tab[k_src:k_src + k_tgt, :]
  wsp_padded = tab[wsp_off:wsp_off + sptk_pad, :]
  norms = tab[norm_off:norm_off + 4, :]               # src_g, src_b, tgt_g, tgt_b
  src_g, src_b = norms[0:1, :], norms[1:2, :]
  tgt_g, tgt_b = norms[2:3, :], norms[3:4, :]
  d = tab.shape[1]

  # ---- FaceEncoderEmbedding: ONE fused K=k_src gather matmul over Bt*Lsrc rows
  src_ids = src_ref[...]                               # (bt*lsrc_pad, 8) int32
  r_src = bt * lsrc_pad
  cols = jax.lax.broadcasted_iota(jnp.int32, (r_src, k_src), 1)
  # value / coord / pos occupy disjoint column ranges, so OR == sum of one-hots
  oh_src = ((cols == src_ids[:, 0:1])
            | (cols == src_ids[:, 1:2] + off_coord)
            | (cols == src_ids[:, 2:3] + off_pos)).astype(f32)
  emb = mm(oh_src, src_tab).reshape(bt, lsrc_pad, d)   # one K=k_src MXU pass

  # group-sum of each vertex's 3 coordinate tokens (drops the trailing token);
  # shared selector, batched over bt (no block-diagonal blow-up across batches).
  row_n = jax.lax.broadcasted_iota(jnp.int32, (bt, nv, lsrc_pad), 1)
  col_l = jax.lax.broadcasted_iota(jnp.int32, (bt, nv, lsrc_pad), 2)
  gsum = ((col_l >= 3 * row_n) & (col_l < 3 * row_n + 3)
          & (col_l < lsrc - 1)).astype(f32)
  # reference scales token embeddings before sum+LayerNorm; kept for exact
  # numerics (LayerNorm makes it almost, but not exactly, a no-op due to eps).
  enc = jnp.einsum('bnl,bld->bnd', gsum, emb,
                   preferred_element_type=f32) * scale           # (bt, nv, d)
  # TODO(synk): src_reformer is not in the reference source -> identity
  enc = layer_norm(enc, src_g, src_b)

  # ---- FaceDecoderEmbedding -------------------------------------------------
  tgt_ids = tgt_ref[...]                               # (bt*t_pad, 8) int32
  r_tgt = bt * t_pad
  rv_mask = pltpu.bitcast(tgt_ids[:, 1:2], f32).reshape(bt, t_pad, 1)
  re_mask = pltpu.bitcast(tgt_ids[:, 3:4], f32)
  colt = jax.lax.broadcasted_iota(jnp.int32, (r_tgt, k_tgt), 1)
  # sptk / in-pos / out-pos fused into one K=k_tgt gather; ref_e_mask folded in.
  oh_tgt = ((colt == tgt_ids[:, 2:3]).astype(f32) * re_mask
            + ((colt == tgt_ids[:, 4:5] + off_ip)
               | (colt == tgt_ids[:, 5:6] + off_op)).astype(f32))
  add_emb = mm(oh_tgt, tgt_tab).reshape(bt, t_pad, d)

  # pointer into the per-batch encoder output; ref_v_mask folded in.
  rv_ids = tgt_ids[:, 0:1].reshape(bt, t_pad, 1)
  colv = jax.lax.broadcasted_iota(jnp.int32, (bt, t_pad, nv), 2)
  oh_ptr = (colv == rv_ids).astype(f32) * rv_mask
  ptr = jnp.einsum('btn,bnd->btd', oh_ptr, enc,
                   preferred_element_type=f32)                    # (bt, t_pad, d)
  dec = ptr + add_emb * scale
  # TODO(synk): tgt_reformer is not in the reference source -> identity
  dec = layer_norm(dec, tgt_g, tgt_b)

  # ---- pointer logits against [sptk (8-padded) ; enc ; 0-pad] at S_pad=128 ----
  s_pad = logits_ref.shape[-1]
  parts = [jnp.broadcast_to(wsp_padded[None], (bt, sptk_pad, d)), enc]
  if s_pad - sptk_pad - nv > 0:
    parts.append(jnp.zeros((bt, s_pad - sptk_pad - nv, d), f32))
  e_all = jnp.concatenate(parts, axis=1)                          # (bt, s_pad, d)
  logits = jnp.einsum('btd,bsd->bts', dec, e_all,
                      preferred_element_type=f32)                 # (bt, t_pad, s_pad)
  logits_ref[...] = logits                                        # dense 128-lane store

  # ---- masked cross-entropy (ignore_index=pad_id) + accuracy partials --------
  lg = logits.reshape(r_tgt, s_pad)
  tgt = tgt_ids[:, 6:7]                                           # (r_tgt, 1)
  col = jax.lax.broadcasted_iota(jnp.int32, (r_tgt, s_pad), 1)
  valid_col = (col < n_sptk) | ((col >= sptk_pad) & (col < sptk_pad + nv))
  ml = jnp.where(valid_col, lg, -1e30)
  m = jnp.max(ml, axis=-1, keepdims=True)
  lse = m + jnp.log(jnp.sum(jnp.exp(ml - m), axis=-1, keepdims=True))
  # remap original target ids into the sptk-padded column layout
  tr = jnp.where(tgt < n_sptk, tgt, tgt + (sptk_pad - n_sptk))
  tgt_logit = jnp.sum(jnp.where(col == tr, ml, 0.0), axis=-1, keepdims=True)
  # NOTE: out-of-range targets are the caller's responsibility (torch CE raises).
  valid = tgt != pad_id
  loss_sum = jnp.sum(jnp.where(valid, lse - tgt_logit, 0.0), keepdims=True)
  count = jnp.sum(valid.astype(f32), keepdims=True)
  pred = jnp.min(jnp.where(ml == m, col, s_pad), axis=-1, keepdims=True)
  correct = jnp.sum(jnp.where(valid & (pred == tr), 1.0, 0.0), keepdims=True)

  lane = jax.lax.broadcasted_iota(jnp.int32, (1, stats_ref.shape[-1]), 1)
  stats_ref[0] = (jnp.where(lane == 0, loss_sum, 0.0)
                  + jnp.where(lane == 1, count, 0.0)
                  + jnp.where(lane == 2, correct, 0.0))


# ----------------------------------------------------------------------------
# FacePolyGen forward (loss, accuracy, logits) — one fused pallas_call.
# ----------------------------------------------------------------------------
def face_polygen_forward(params, src_tokens, tgt_tokens, pad_id, block_batch=None):
  f32, i32 = jnp.float32, jnp.int32

  wv, wc, wp = (params["src_value_embed"], params["src_coord_embed"],
                params["src_pos_embed"])
  wsp, wip, wop = (params["tgt_value_embed"], params["tgt_inpos_embed"],
                   params["tgt_outpos_embed"])
  D = wv.shape[1]
  scale = math.sqrt(D)

  B, Lsrc = src_tokens["value_tokens"].shape
  T = tgt_tokens["ref_v_ids"].shape[1]
  Nv = -(-(Lsrc - 1) // 3)                     # ceil, matches torch.split(3)
  n_sptk = wsp.shape[0]
  sptk_pad = _round_up(max(n_sptk, 1), 8)
  S_pad = _round_up(sptk_pad + Nv, 128)
  Lsrc_pad = _round_up(Lsrc, 8)
  T_pad = _round_up(T, 8)

  # batch tile: biggest power-of-two divisor of B that leaves >= 2 grid steps
  # (both v7x TensorCores get whole steps via the "parallel" batch axis).
  if block_batch is None:
    cands = [c for c in (8, 4, 2, 1) if B % c == 0 and B // c >= 2]
    Bt = cands[0] if cands else B
  else:
    Bt = block_batch
  assert B % Bt == 0, "block_batch must divide batch"
  G = B // Bt

  def pad_len(x, L_to, fill):
    if x.shape[1] == L_to:
      return x
    return jnp.pad(x, ((0, 0), (0, L_to - x.shape[1])), constant_values=fill)

  def mask_bits(x, L_to):                      # exact f32 mask -> int32 bits
    return jax.lax.bitcast_convert_type(pad_len(x.astype(f32), L_to, 0.0), i32)

  # one packed int32 stream for the encoder tokens ...
  z_src = jnp.zeros((B, Lsrc_pad), i32)
  src_pack = jnp.stack(
      [pad_len(src_tokens["value_tokens"].astype(i32), Lsrc_pad, 0),
       pad_len(src_tokens["coord_type_tokens"].astype(i32), Lsrc_pad, 0),
       pad_len(src_tokens["position_tokens"].astype(i32), Lsrc_pad, 0),
       z_src, z_src, z_src, z_src, z_src],
      axis=-1).reshape(B * Lsrc_pad, 8)

  # ... and one packed int32 stream for the decoder tokens / masks / targets.
  z_tgt = jnp.zeros((B, T_pad), i32)
  tgt_pack = jnp.stack(
      [pad_len(tgt_tokens["ref_v_ids"].astype(i32), T_pad, 0),
       mask_bits(tgt_tokens["ref_v_mask"], T_pad),
       pad_len(tgt_tokens["ref_e_ids"].astype(i32), T_pad, 0),
       mask_bits(tgt_tokens["ref_e_mask"], T_pad),
       pad_len(tgt_tokens["in_position_tokens"].astype(i32), T_pad, 0),
       pad_len(tgt_tokens["out_position_tokens"].astype(i32), T_pad, 0),
       pad_len(tgt_tokens["target_tokens"].astype(i32), T_pad, pad_id),
       z_tgt],
      axis=-1).reshape(B * T_pad, 8)

  # all parameter tables fused into one row-padded (TAB_ROWS, D) constant:
  #   [value|coord|pos -> K_src][sptk|inpos|outpos -> K_tgt][sptk 8-pad][4 norm rows]
  Vv, Vc, Vp = wv.shape[0], wc.shape[0], wp.shape[0]
  Vsp, Vip, Vop = wsp.shape[0], wip.shape[0], wop.shape[0]
  K_src = _round_up(Vv + Vc + Vp, 128)
  K_tgt = _round_up(Vsp + Vip + Vop, 128)
  src_tab = (jnp.zeros((K_src, D), f32)
             .at[:Vv].set(wv)
             .at[Vv:Vv + Vc].set(wc)
             .at[Vv + Vc:Vv + Vc + Vp].set(wp))
  tgt_tab = (jnp.zeros((K_tgt, D), f32)
             .at[:Vsp].set(wsp)
             .at[Vsp:Vsp + Vip].set(wip)
             .at[Vsp + Vip:Vsp + Vip + Vop].set(wop))
  wsp_padded = jnp.zeros((sptk_pad, D), f32).at[:Vsp].set(wsp)
  norms = jnp.concatenate([params["src_norm_g"], params["src_norm_b"],
                           params["tgt_norm_g"], params["tgt_norm_b"]], axis=0)
  tab = jnp.concatenate([src_tab, tgt_tab, wsp_padded, norms], axis=0)
  pad_rows = _round_up(tab.shape[0], 8) - tab.shape[0]
  if pad_rows:
    tab = jnp.concatenate([tab, jnp.zeros((pad_rows, D), f32)], axis=0)
  wsp_off = K_src + K_tgt
  norm_off = wsp_off + sptk_pad

  kernel = functools.partial(
      _fused_kernel, bt=Bt, lsrc=Lsrc, lsrc_pad=Lsrc_pad, t_pad=T_pad, nv=Nv,
      n_sptk=n_sptk, sptk_pad=sptk_pad, pad_id=pad_id, scale=scale, eps=LN_EPS,
      off_coord=Vv, off_pos=Vv + Vc, k_src=K_src,
      off_ip=Vsp, off_op=Vsp + Vip, k_tgt=K_tgt,
      wsp_off=wsp_off, norm_off=norm_off)

  logits_pad, stats = pl.pallas_call(
      kernel,
      grid=(G,),
      in_specs=[
          pl.BlockSpec((Bt * Lsrc_pad, 8), lambda i: (i, 0)),
          pl.BlockSpec((Bt * T_pad, 8), lambda i: (i, 0)),
          pl.BlockSpec(tab.shape, lambda i: (0, 0)),
      ],
      out_specs=[
          pl.BlockSpec((Bt, T_pad, S_pad), lambda i: (i, 0, 0)),
          pl.BlockSpec((1, 1, 128), lambda i: (i, 0, 0)),
      ],
      out_shape=[
          jax.ShapeDtypeStruct((B, T_pad, S_pad), jnp.float32),
          jax.ShapeDtypeStruct((G, 1, 128), jnp.float32),
      ],
      compiler_params=pltpu.CompilerParams(
          dimension_semantics=("parallel",)),
  )(src_pack, tgt_pack, tab)

  totals = jnp.sum(stats[:, 0, :3], axis=0)    # tiny scalar reduce in XLA
  denom = jnp.maximum(totals[1], 1.0)          # guard: all targets == pad_id
  loss = totals[0] / denom
  acc = totals[2] / denom
  # restore the original [sptk ; vertices] column layout and the true T
  logits = jnp.concatenate(
      [logits_pad[:, :T, :n_sptk],
       logits_pad[:, :T, sptk_pad:sptk_pad + Nv]], axis=-1)
  return loss, acc, logits


# ----------------------------------------------------------------------------
# Deterministic parameter / input construction
# ----------------------------------------------------------------------------
def build_params(key, D):
  ks = jax.random.split(key, 6)
  u = lambda k, shape: jax.random.uniform(k, shape, jnp.float32, -0.05, 0.05)
  return {
      # FaceEncoderEmbedding (shrunken vocabs)
      "src_value_embed": u(ks[0], (32, D)),
      "src_coord_embed": u(ks[1], (4, D)),
      "src_pos_embed":   u(ks[2], (64, D)),
      # FaceDecoderEmbedding
      "tgt_value_embed":  u(ks[3], (3, D)),    # special-token embeddings
      "tgt_inpos_embed":  u(ks[4], (16, D)),
      "tgt_outpos_embed": u(ks[5], (64, D)),
      # LayerNorms
      "src_norm_g": jnp.ones((1, D), jnp.float32),
      "src_norm_b": jnp.zeros((1, D), jnp.float32),
      "tgt_norm_g": jnp.ones((1, D), jnp.float32),
      "tgt_norm_b": jnp.zeros((1, D), jnp.float32),
  }


if __name__ == "__main__":
  key = jax.random.PRNGKey(0)
  B, Nv, T, D = 8, 8, 8, EMBED_DIM
  Lsrc = 3 * Nv + 1          # 3 coord tokens per vertex + trailing token
  n_sptk = 3
  S = n_sptk + Nv            # output pointer vocab
  pad_id = 2

  kp, *kt = jax.random.split(key, 12)
  params = build_params(kp, D)

  src_tokens = {
      "value_tokens":      jax.random.randint(kt[0], (B, Lsrc), 0, 32, jnp.int32),
      "coord_type_tokens": jax.random.randint(kt[1], (B, Lsrc), 0, 4, jnp.int32),
      "position_tokens":   jax.random.randint(kt[2], (B, Lsrc), 0, 64, jnp.int32),
      "padding_mask":      jnp.zeros((B, Lsrc), jnp.bool_),  # unused (Reformer = identity)
  }

  ref_v_mask = jax.random.bernoulli(kt[3], 0.7, (B, T)).astype(jnp.float32)
  tgt_tokens = {
      "ref_v_ids":           jax.random.randint(kt[4], (B, T), 0, Nv, jnp.int32),
      "ref_v_mask":          ref_v_mask,
      "ref_e_ids":           jax.random.randint(kt[5], (B, T), 0, n_sptk, jnp.int32),
      "ref_e_mask":          1.0 - ref_v_mask,
      "in_position_tokens":  jax.random.randint(kt[6], (B, T), 0, 16, jnp.int32),
      "out_position_tokens": jax.random.randint(kt[7], (B, T), 0, 64, jnp.int32),
      "target_tokens":       jax.random.randint(kt[8], (B, T), 0, S, jnp.int32),
      "padding_mask":        jnp.zeros((B, T), jnp.bool_),   # unused (Reformer = identity)
  }
  # make sure the ignore_index path is exercised and count > 0
  tgt = tgt_tokens["target_tokens"].at[0, 0].set(pad_id).at[0, 1].set(5)
  tgt_tokens["target_tokens"] = tgt

  loss, acc, logits = face_polygen_forward(params, src_tokens, tgt_tokens, pad_id)
  jax.block_until_ready((loss, acc, logits))
  print("KERNEL_OK")
</pallas_src>

<mosaic_0001>
module attributes {stable_mosaic.version = 11 : i64} {
  func.func @_fused_kernel(%arg0: i32, %arg1: memref<128x8xi32, #tpu.memory_space<vmem>>, %arg2: memref<32x8xi32, #tpu.memory_space<vmem>>, %arg3: memref<272x32xf32, #tpu.memory_space<vmem>>, %arg4: memref<4x8x128xf32, #tpu.memory_space<vmem>>, %arg5: memref<1x1x128xf32, #tpu.memory_space<vmem>>) attributes {dimension_semantics = [#tpu.dimension_semantics<parallel>], iteration_bounds = array<i64: 2>, scalar_prefetch = 0 : i64, scratch_operands = 0 : i64, tpu.core_type = #tpu.core_type<tc>, window_params = [{transform_indices = @transform_0, window_bounds = array<i64: 128, 8>}, {transform_indices = @transform_1, window_bounds = array<i64: 32, 8>}, {pipeline_mode = #tpu.pipeline_mode<synchronous>, transform_indices = @transform_2, window_bounds = array<i64: 272, 32>}, {transform_indices = @transform_3, window_bounds = array<i64: 4, 8, 128>}, {transform_indices = @transform_4, window_bounds = array<i64: 1, 1, 128>}]} {
    %c0 = arith.constant 0 : index
    %c0_0 = arith.constant 0 : index
    %0 = vector.load %arg3[%c0, %c0_0] : memref<272x32xf32, #tpu.memory_space<vmem>>, vector<272x32xf32>
    %1 = vector.extract_strided_slice %0 {offsets = [0, 0], sizes = [128, 32], strides = [1, 1]} : vector<272x32xf32> to vector<128x32xf32>
    %2 = vector.extract_strided_slice %0 {offsets = [128, 0], sizes = [128, 32], strides = [1, 1]} : vector<272x32xf32> to vector<128x32xf32>
    %3 = vector.extract_strided_slice %0 {offsets = [256, 0], sizes = [8, 32], strides = [1, 1]} : vector<272x32xf32> to vector<8x32xf32>
    %4 = vector.extract_strided_slice %0 {offsets = [264, 0], sizes = [4, 32], strides = [1, 1]} : vector<272x32xf32> to vector<4x32xf32>
    %5 = vector.extract_strided_slice %4 {offsets = [0, 0], sizes = [1, 32], strides = [1, 1]} : vector<4x32xf32> to vector<1x32xf32>
    %6 = vector.extract_strided_slice %4 {offsets = [1, 0], sizes = [1, 32], strides = [1, 1]} : vector<4x32xf32> to vector<1x32xf32>
    %7 = vector.extract_strided_slice %4 {offsets = [2, 0], sizes = [1, 32], strides = [1, 1]} : vector<4x32xf32> to vector<1x32xf32>
    %8 = vector.extract_strided_slice %4 {offsets = [3, 0], sizes = [1, 32], strides = [1, 1]} : vector<4x32xf32> to vector<1x32xf32>
    %c0_1 = arith.constant 0 : index
    %c0_2 = arith.constant 0 : index
    %9 = vector.load %arg1[%c0_1, %c0_2] : memref<128x8xi32, #tpu.memory_space<vmem>>, vector<128x8xi32>
    %10 = tpu.iota {dimensions = array<i32: 1>} : vector<128x128xi32>
    %11 = vector.extract_strided_slice %9 {offsets = [0, 0], sizes = [128, 1], strides = [1, 1]} : vector<128x8xi32> to vector<128x1xi32>
    %12 = vector.broadcast %11 : vector<128x1xi32> to vector<128x128xi32>
    %13 = arith.cmpi eq, %10, %12 : vector<128x128xi32>
    %14 = vector.extract_strided_slice %9 {offsets = [0, 1], sizes = [128, 1], strides = [1, 1]} : vector<128x8xi32> to vector<128x1xi32>
    %c32_i32 = arith.constant 32 : i32
    %15 = vector.broadcast %c32_i32 : i32 to vector<128x1xi32>
    %16 = arith.addi %14, %15 : vector<128x1xi32>
    %17 = vector.broadcast %16 : vector<128x1xi32> to vector<128x128xi32>
    %18 = arith.cmpi eq, %10, %17 : vector<128x128xi32>
    %19 = arith.ori %13, %18 : vector<128x128xi1>
    %20 = vector.extract_strided_slice %9 {offsets = [0, 2], sizes = [128, 1], strides = [1, 1]} : vector<128x8xi32> to vector<128x1xi32>
    %c36_i32 = arith.constant 36 : i32
    %21 = vector.broadcast %c36_i32 : i32 to vector<128x1xi32>
    %22 = arith.addi %20, %21 : vector<128x1xi32>
    %23 = vector.broadcast %22 : vector<128x1xi32> to vector<128x128xi32>
    %24 = arith.cmpi eq, %10, %23 : vector<128x128xi32>
    %25 = arith.ori %19, %24 : vector<128x128xi1>
    %26 = arith.extui %25 : vector<128x128xi1> to vector<128x128xi32>
    %27 = arith.sitofp %26 : vector<128x128xi32> to vector<128x128xf32>
    %cst = arith.constant dense<0.000000e+00> : vector<128x32xf32>
    %28 = tpu.matmul %27, %1, %cst {dimension_numbers = #tpu.dot_dimension_numbers<[1], [0], [0], [1], [0, 0, 1, 1], [], []>} : vector<128x128xf32>, vector<128x32xf32>, vector<128x32xf32> -> vector<128x32xf32>
    %29 = vector.shape_cast %28 : vector<128x32xf32> to vector<4x32x32xf32>
    %30 = tpu.iota {dimensions = array<i32: 1>} : vector<4x8x32xi32>
    %31 = tpu.iota {dimensions = array<i32: 2>} : vector<4x8x32xi32>
    %c3_i32 = arith.constant 3 : i32
    %32 = vector.broadcast %c3_i32 : i32 to vector<4x8x32xi32>
    %33 = arith.muli %32, %30 : vector<4x8x32xi32>
    %34 = arith.cmpi sge, %31, %33 : vector<4x8x32xi32>
    %c3_i32_3 = arith.constant 3 : i32
    %35 = vector.broadcast %c3_i32_3 : i32 to vector<4x8x32xi32>
    %36 = arith.muli %35, %30 : vector<4x8x32xi32>
    %c3_i32_4 = arith.constant 3 : i32
    %37 = vector.broadcast %c3_i32_4 : i32 to vector<4x8x32xi32>
    %38 = arith.addi %36, %37 : vector<4x8x32xi32>
    %39 = arith.cmpi slt, %31, %38 : vector<4x8x32xi32>
    %40 = arith.andi %34, %39 : vector<4x8x32xi1>
    %c24_i32 = arith.constant 24 : i32
    %41 = vector.broadcast %c24_i32 : i32 to vector<4x8x32xi32>
    %42 = arith.cmpi slt, %31, %41 : vector<4x8x32xi32>
    %43 = arith.andi %40, %42 : vector<4x8x32xi1>
    %44 = arith.extui %43 : vector<4x8x32xi1> to vector<4x8x32xi32>
    %45 = arith.sitofp %44 : vector<4x8x32xi32> to vector<4x8x32xf32>
    "tpu.trace_start"() <{level = 10 : i32, message = "bnl,bld->bnd"}> : () -> ()
    %cst_5 = arith.constant dense<0.000000e+00> : vector<4x8x32xf32>
    %46 = tpu.matmul %45, %29, %cst_5 {dimension_numbers = #tpu.dot_dimension_numbers<[2], [1], [1], [2], [0, 0, 0, 1, 1, 2], [0], [0]>} : vector<4x8x32xf32>, vector<4x32x32xf32>, vector<4x8x32xf32> -> vector<4x8x32xf32>
    "tpu.trace_stop"() : () -> ()
    %cst_6 = arith.constant 5.65685415 : f32
    %47 = vector.broadcast %cst_6 : f32 to vector<4x8x32xf32>
    %48 = arith.mulf %46, %47 : vector<4x8x32xf32>
    %cst_7 = arith.constant dense<0.000000e+00> : vector<4x8xf32>
    %49 = vector.multi_reduction <add>, %48, %cst_7 [2] : vector<4x8x32xf32> to vector<4x8xf32>
    %50 = vector.shape_cast %49 : vector<4x8xf32> to vector<4x8x1xf32>
    %cst_8 = arith.constant 3.200000e+01 : f32
    %51 = vector.broadcast %cst_8 : f32 to vector<4x8x1xf32>
    %52 = arith.divf %50, %51 : vector<4x8x1xf32>
    %53 = vector.broadcast %52 : vector<4x8x1xf32> to vector<4x8x32xf32>
    %54 = arith.subf %48, %53 : vector<4x8x32xf32>
    %55 = arith.mulf %54, %54 : vector<4x8x32xf32>
    %cst_9 = arith.constant dense<0.000000e+00> : vector<4x8xf32>
    %56 = vector.multi_reduction <add>, %55, %cst_9 [2] : vector<4x8x32xf32> to vector<4x8xf32>
    %57 = vector.shape_cast %56 : vector<4x8xf32> to vector<4x8x1xf32>
    %cst_10 = arith.constant 3.200000e+01 : f32
    %58 = vector.broadcast %cst_10 : f32 to vector<4x8x1xf32>
    %59 = arith.divf %57, %58 : vector<4x8x1xf32>
    %60 = vector.broadcast %52 : vector<4x8x1xf32> to vector<4x8x32xf32>
    %61 = arith.subf %48, %60 : vector<4x8x32xf32>
    %cst_11 = arith.constant 9.99999974E-6 : f32
    %62 = vector.broadcast %cst_11 : f32 to vector<4x8x1xf32>
    %63 = arith.addf %59, %62 : vector<4x8x1xf32>
    %64 = math.rsqrt %63 : vector<4x8x1xf32>
    %65 = vector.broadcast %64 : vector<4x8x1xf32> to vector<4x8x32xf32>
    %66 = arith.mulf %61, %65 : vector<4x8x32xf32>
    %67 = vector.shape_cast %5 : vector<1x32xf32> to vector<1x1x32xf32>
    %68 = vector.broadcast %67 : vector<1x1x32xf32> to vector<4x8x32xf32>
    %69 = arith.mulf %66, %68 : vector<4x8x32xf32>
    %70 = vector.shape_cast %6 : vector<1x32xf32> to vector<1x1x32xf32>
    %71 = vector.broadcast %70 : vector<1x1x32xf32> to vector<4x8x32xf32>
    %72 = arith.addf %69, %71 : vector<4x8x32xf32>
    %c0_12 = arith.constant 0 : index
    %c0_13 = arith.constant 0 : index
    %73 = vector.load %arg2[%c0_12, %c0_13] : memref<32x8xi32, #tpu.memory_space<vmem>>, vector<32x8xi32>
    %74 = vector.extract_strided_slice %73 {offsets = [0, 1], sizes = [32, 1], strides = [1, 1]} : vector<32x8xi32> to vector<32x1xi32>
    %75 = tpu.bitcast %74 : vector<32x1xi32> -> vector<32x1xf32>
    %76 = vector.shape_cast %75 : vector<32x1xf32> to vector<4x8x1xf32>
    %77 = vector.extract_strided_slice %73 {offsets = [0, 3], sizes = [32, 1], strides = [1, 1]} : vector<32x8xi32> to vector<32x1xi32>
    %78 = tpu.bitcast %77 : vector<32x1xi32> -> vector<32x1xf32>
    %79 = tpu.iota {dimensions = array<i32: 1>} : vector<32x128xi32>
    %80 = vector.extract_strided_slice %73 {offsets = [0, 2], sizes = [32, 1], strides = [1, 1]} : vector<32x8xi32> to vector<32x1xi32>
    %81 = vector.broadcast %80 : vector<32x1xi32> to vector<32x128xi32>
    %82 = arith.cmpi eq, %79, %81 : vector<32x128xi32>
    %83 = arith.extui %82 : vector<32x128xi1> to vector<32x128xi32>
    %84 = arith.sitofp %83 : vector<32x128xi32> to vector<32x128xf32>
    %85 = vector.broadcast %78 : vector<32x1xf32> to vector<32x128xf32>
    %86 = arith.mulf %84, %85 : vector<32x128xf32>
    %87 = vector.extract_strided_slice %73 {offsets = [0, 4], sizes = [32, 1], strides = [1, 1]} : vector<32x8xi32> to vector<32x1xi32>
    %c3_i32_14 = arith.constant 3 : i32
    %88 = vector.broadcast %c3_i32_14 : i32 to vector<32x1xi32>
    %89 = arith.addi %87, %88 : vector<32x1xi32>
    %90 = vector.broadcast %89 : vector<32x1xi32> to vector<32x128xi32>
    %91 = arith.cmpi eq, %79, %90 : vector<32x128xi32>
    %92 = vector.extract_strided_slice %73 {offsets = [0, 5], sizes = [32, 1], strides = [1, 1]} : vector<32x8xi32> to vector<32x1xi32>
    %c19_i32 = arith.constant 19 : i32
    %93 = vector.broadcast %c19_i32 : i32 to vector<32x1xi32>
    %94 = arith.addi %92, %93 : vector<32x1xi32>
    %95 = vector.broadcast %94 : vector<32x1xi32> to vector<32x128xi32>
    %96 = arith.cmpi eq, %79, %95 : vector<32x128xi32>
    %97 = arith.ori %91, %96 : vector<32x128xi1>
    %98 = arith.extui %97 : vector<32x128xi1> to vector<32x128xi32>
    %99 = arith.sitofp %98 : vector<32x128xi32> to vector<32x128xf32>
    %100 = arith.addf %86, %99 : vector<32x128xf32>
    %cst_15 = arith.constant dense<0.000000e+00> : vector<32x32xf32>
    %101 = tpu.matmul %100, %2, %cst_15 {dimension_numbers = #tpu.dot_dimension_numbers<[1], [0], [0], [1], [0, 0, 1, 1], [], []>} : vector<32x128xf32>, vector<128x32xf32>, vector<32x32xf32> -> vector<32x32xf32>
    %102 = vector.shape_cast %101 : vector<32x32xf32> to vector<4x8x32xf32>
    %103 = vector.extract_strided_slice %73 {offsets = [0, 0], sizes = [32, 1], strides = [1, 1]} : vector<32x8xi32> to vector<32x1xi32>
    %104 = vector.shape_cast %103 : vector<32x1xi32> to vector<4x8x1xi32>
    %105 = tpu.iota {dimensions = array<i32: 2>} : vector<4x8x8xi32>
    %106 = vector.broadcast %104 : vector<4x8x1xi32> to vector<4x8x8xi32>
    %107 = arith.cmpi eq, %105, %106 : vector<4x8x8xi32>
    %108 = arith.extui %107 : vector<4x8x8xi1> to vector<4x8x8xi32>
    %109 = arith.sitofp %108 : vector<4x8x8xi32> to vector<4x8x8xf32>
    %110 = vector.broadcast %76 : vector<4x8x1xf32> to vector<4x8x8xf32>
    %111 = arith.mulf %109, %110 : vector<4x8x8xf32>
    "tpu.trace_start"() <{level = 10 : i32, message = "btn,bnd->btd"}> : () -> ()
    %cst_16 = arith.constant dense<0.000000e+00> : vector<4x8x32xf32>
    %112 = tpu.matmul %111, %72, %cst_16 {dimension_numbers = #tpu.dot_dimension_numbers<[2], [1], [1], [2], [0, 0, 0, 1, 1, 2], [0], [0]>} : vector<4x8x8xf32>, vector<4x8x32xf32>, vector<4x8x32xf32> -> vector<4x8x32xf32>
    "tpu.trace_stop"() : () -> ()
    %cst_17 = arith.constant 5.65685415 : f32
    %113 = vector.broadcast %cst_17 : f32 to vector<4x8x32xf32>
    %114 = arith.mulf %102, %113 : vector<4x8x32xf32>
    %115 = arith.addf %112, %114 : vector<4x8x32xf32>
    %cst_18 = arith.constant dense<0.000000e+00> : vector<4x8xf32>
    %116 = vector.multi_reduction <add>, %115, %cst_18 [2] : vector<4x8x32xf32> to vector<4x8xf32>
    %117 = vector.shape_cast %116 : vector<4x8xf32> to vector<4x8x1xf32>
    %cst_19 = arith.constant 3.200000e+01 : f32
    %118 = vector.broadcast %cst_19 : f32 to vector<4x8x1xf32>
    %119 = arith.divf %117, %118 : vector<4x8x1xf32>
    %120 = vector.broadcast %119 : vector<4x8x1xf32> to vector<4x8x32xf32>
    %121 = arith.subf %115, %120 : vector<4x8x32xf32>
    %122 = arith.mulf %121, %121 : vector<4x8x32xf32>
    %cst_20 = arith.constant dense<0.000000e+00> : vector<4x8xf32>
    %123 = vector.multi_reduction <add>, %122, %cst_20 [2] : vector<4x8x32xf32> to vector<4x8xf32>
    %124 = vector.shape_cast %123 : vector<4x8xf32> to vector<4x8x1xf32>
    %cst_21 = arith.constant 3.200000e+01 : f32
    %125 = vector.broadcast %cst_21 : f32 to vector<4x8x1xf32>
    %126 = arith.divf %124, %125 : vector<4x8x1xf32>
    %127 = vector.broadcast %119 : vector<4x8x1xf32> to vector<4x8x32xf32>
    %128 = arith.subf %115, %127 : vector<4x8x32xf32>
    %cst_22 = arith.constant 9.99999974E-6 : f32
    %129 = vector.broadcast %cst_22 : f32 to vector<4x8x1xf32>
    %130 = arith.addf %126, %129 : vector<4x8x1xf32>
    %131 = math.rsqrt %130 : vector<4x8x1xf32>
    %132 = vector.broadcast %131 : vector<4x8x1xf32> to vector<4x8x32xf32>
    %133 = arith.mulf %128, %132 : vector<4x8x32xf32>
    %134 = vector.shape_cast %7 : vector<1x32xf32> to vector<1x1x32xf32>
    %135 = vector.broadcast %134 : vector<1x1x32xf32> to vector<4x8x32xf32>
    %136 = arith.mulf %133, %135 : vector<4x8x32xf32>
    %137 = vector.shape_cast %8 : vector<1x32xf32> to vector<1x1x32xf32>
    %138 = vector.broadcast %137 : vector<1x1x32xf32> to vector<4x8x32xf32>
    %139 = arith.addf %136, %138 : vector<4x8x32xf32>
    %140 = vector.shape_cast %3 : vector<8x32xf32> to vector<1x8x32xf32>
    %141 = vector.shape_cast %140 : vector<1x8x32xf32> to vector<1x8x32xf32>
    %142 = vector.broadcast %141 : vector<1x8x32xf32> to vector<4x8x32xf32>
    %cst_23 = arith.constant 0.000000e+00 : f32
    %143 = vector.broadcast %cst_23 : f32 to vector<4x112x32xf32>
    %144 = tpu.concatenate %142, %72, %143 in 1 : vector<4x8x32xf32>, vector<4x8x32xf32>, vector<4x112x32xf32> -> vector<4x128x32xf32>
    "tpu.trace_start"() <{level = 10 : i32, message = "btd,bsd->bts"}> : () -> ()
    %cst_24 = arith.constant dense<0.000000e+00> : vector<4x8x128xf32>
    %145 = tpu.matmul %139, %144, %cst_24 {dimension_numbers = #tpu.dot_dimension_numbers<[2], [2], [1], [1], [0, 0, 0, 1, 1, 1], [0], [0]>} : vector<4x8x32xf32>, vector<4x128x32xf32>, vector<4x8x128xf32> -> vector<4x8x128xf32>
    "tpu.trace_stop"() : () -> ()
    %c0_25 = arith.constant 0 : index
    %c0_26 = arith.constant 0 : index
    %c0_27 = arith.constant 0 : index
    %146 = vector.load %arg4[%c0_25, %c0_26, %c0_27] : memref<4x8x128xf32, #tpu.memory_space<vmem>>, vector<4x8x128xf32>
    tpu.vector_store %arg4[%c0_25, %c0_26, %c0_27], %145 {strides = array<i32>} : memref<4x8x128xf32, #tpu.memory_space<vmem>>, vector<4x8x128xf32>,
    %147 = vector.shape_cast %145 : vector<4x8x128xf32> to vector<32x128xf32>
    %148 = vector.extract_strided_slice %73 {offsets = [0, 6], sizes = [32, 1], strides = [1, 1]} : vector<32x8xi32> to vector<32x1xi32>
    %149 = tpu.iota {dimensions = array<i32: 1>} : vector<32x128xi32>
    %c3_i32_28 = arith.constant 3 : i32
    %150 = vector.broadcast %c3_i32_28 : i32 to vector<32x128xi32>
    %151 = arith.cmpi slt, %149, %150 : vector<32x128xi32>
    %c8_i32 = arith.constant 8 : i32
    %152 = vector.broadcast %c8_i32 : i32 to vector<32x128xi32>
    %153 = arith.cmpi sge, %149, %152 : vector<32x128xi32>
    %c16_i32 = arith.constant 16 : i32
    %154 = vector.broadcast %c16_i32 : i32 to vector<32x128xi32>
    %155 = arith.cmpi slt, %149, %154 : vector<32x128xi32>
    %156 = arith.andi %153, %155 : vector<32x128xi1>
    %157 = arith.ori %151, %156 : vector<32x128xi1>
    %cst_29 = arith.constant -1.000000e+30 : f32
    %158 = vector.broadcast %cst_29 : f32 to vector<32x128xf32>
    %159 = arith.select %157, %147, %158 : vector<32x128xi1>, vector<32x128xf32>
    %cst_30 = arith.constant dense<0xFF800000> : vector<32xf32>
    %160 = vector.multi_reduction <maximumf>, %159, %cst_30 [1] : vector<32x128xf32> to vector<32xf32>
    %161 = vector.shape_cast %160 : vector<32xf32> to vector<32x1xf32>
    %162 = vector.broadcast %161 : vector<32x1xf32> to vector<32x128xf32>
    %163 = arith.subf %159, %162 : vector<32x128xf32>
    %164 = math.exp %163 : vector<32x128xf32>
    %cst_31 = arith.constant dense<0.000000e+00> : vector<32xf32>
    %165 = vector.multi_reduction <add>, %164, %cst_31 [1] : vector<32x128xf32> to vector<32xf32>
    %166 = vector.shape_cast %165 : vector<32xf32> to vector<32x1xf32>
    %167 = math.log %166 : vector<32x1xf32>
    %168 = arith.addf %161, %167 : vector<32x1xf32>
    %c3_i32_32 = arith.constant 3 : i32
    %169 = vector.broadcast %c3_i32_32 : i32 to vector<32x1xi32>
    %170 = arith.cmpi slt, %148, %169 : vector<32x1xi32>
    %c5_i32 = arith.constant 5 : i32
    %171 = vector.broadcast %c5_i32 : i32 to vector<32x1xi32>
    %172 = arith.addi %148, %171 : vector<32x1xi32>
    %173 = arith.select %170, %148, %172 : vector<32x1xi1>, vector<32x1xi32>
    %174 = vector.broadcast %173 : vector<32x1xi32> to vector<32x128xi32>
    %175 = arith.cmpi eq, %149, %174 : vector<32x128xi32>
    %cst_33 = arith.constant 0.000000e+00 : f32
    %176 = vector.broadcast %cst_33 : f32 to vector<32x128xf32>
    %177 = arith.select %175, %159, %176 : vector<32x128xi1>, vector<32x128xf32>
    %cst_34 = arith.constant dense<0.000000e+00> : vector<32xf32>
    %178 = vector.multi_reduction <add>, %177, %cst_34 [1] : vector<32x128xf32> to vector<32xf32>
    %179 = vector.shape_cast %178 : vector<32xf32> to vector<32x1xf32>
    %c2_i32 = arith.constant 2 : i32
    %180 = vector.broadcast %c2_i32 : i32 to vector<32x1xi32>
    %181 = arith.cmpi ne, %148, %180 : vector<32x1xi32>
    %182 = arith.subf %168, %179 : vector<32x1xf32>
    %cst_35 = arith.constant 0.000000e+00 : f32
    %183 = vector.broadcast %cst_35 : f32 to vector<32x1xf32>
    %184 = arith.select %181, %182, %183 : vector<32x1xi1>, vector<32x1xf32>
    %185 = vector.shape_cast %184 : vector<32x1xf32> to vector<1x32x1xf32>
    %cst_36 = arith.constant dense<0.000000e+00> : vector<1xf32>
    %186 = vector.multi_reduction <add>, %185, %cst_36 [1, 2] : vector<1x32x1xf32> to vector<1xf32>
    %187 = vector.shape_cast %186 : vector<1xf32> to vector<1x1x1xf32>
    %188 = vector.extract %187[0, 0, 0] : f32 from vector<1x1x1xf32>
    %189 = vector.broadcast %188 : f32 to vector<1x1xf32>
    %190 = arith.extui %181 : vector<32x1xi1> to vector<32x1xi32>
    %191 = arith.sitofp %190 : vector<32x1xi32> to vector<32x1xf32>
    %192 = vector.shape_cast %191 : vector<32x1xf32> to vector<1x32x1xf32>
    %cst_37 = arith.constant dense<0.000000e+00> : vector<1xf32>
    %193 = vector.multi_reduction <add>, %192, %cst_37 [1, 2] : vector<1x32x1xf32> to vector<1xf32>
    %194 = vector.shape_cast %193 : vector<1xf32> to vector<1x1x1xf32>
    %195 = vector.extract %194[0, 0, 0] : f32 from vector<1x1x1xf32>
    %196 = vector.broadcast %195 : f32 to vector<1x1xf32>
    %197 = vector.broadcast %161 : vector<32x1xf32> to vector<32x128xf32>
    %198 = arith.cmpf oeq, %159, %197 : vector<32x128xf32>
    %c128_i32 = arith.constant 128 : i32
    %199 = vector.broadcast %c128_i32 : i32 to vector<32x128xi32>
    %200 = arith.select %198, %149, %199 : vector<32x128xi1>, vector<32x128xi32>
    %cst_38 = arith.constant dense<2147483647> : vector<32xi32>
    %201 = vector.multi_reduction <minsi>, %200, %cst_38 [1] : vector<32x128xi32> to vector<32xi32>
    %202 = vector.shape_cast %201 : vector<32xi32> to vector<32x1xi32>
    %203 = arith.cmpi eq, %202, %173 : vector<32x1xi32>
    %204 = arith.andi %181, %203 : vector<32x1xi1>
    %cst_39 = arith.constant 1.000000e+00 : f32
    %cst_40 = arith.constant 0.000000e+00 : f32
    %205 = vector.broadcast %cst_39 : f32 to vector<32x1xf32>
    %206 = vector.broadcast %cst_40 : f32 to vector<32x1xf32>
    %207 = arith.select %204, %205, %206 : vector<32x1xi1>, vector<32x1xf32>
    %208 = vector.shape_cast %207 : vector<32x1xf32> to vector<1x32x1xf32>
    %cst_41 = arith.constant dense<0.000000e+00> : vector<1xf32>
    %209 = vector.multi_reduction <add>, %208, %cst_41 [1, 2] : vector<1x32x1xf32> to vector<1xf32>
    %210 = vector.shape_cast %209 : vector<1xf32> to vector<1x1x1xf32>
    %211 = vector.extract %210[0, 0, 0] : f32 from vector<1x1x1xf32>
    %212 = vector.broadcast %211 : f32 to vector<1x1xf32>
    %213 = tpu.iota {dimensions = array<i32: 1>} : vector<1x128xi32>
    %c0_i32 = arith.constant 0 : i32
    %214 = vector.broadcast %c0_i32 : i32 to vector<1x128xi32>
    %215 = arith.cmpi eq, %213, %214 : vector<1x128xi32>
    %cst_42 = arith.constant 0.000000e+00 : f32
    %216 = vector.shape_cast %189 : vector<1x1xf32> to vector<1x1xf32>
    %217 = vector.broadcast %216 : vector<1x1xf32> to vector<1x128xf32>
    %218 = vector.broadcast %cst_42 : f32 to vector<1x128xf32>
    %219 = arith.select %215, %217, %218 : vector<1x128xi1>, vector<1x128xf32>
    %c1_i32 = arith.constant 1 : i32
    %220 = vector.broadcast %c1_i32 : i32 to vector<1x128xi32>
    %221 = arith.cmpi eq, %213, %220 : vector<1x128xi32>
    %cst_43 = arith.constant 0.000000e+00 : f32
    %222 = vector.shape_cast %196 : vector<1x1xf32> to vector<1x1xf32>
    %223 = vector.broadcast %222 : vector<1x1xf32> to vector<1x128xf32>
    %224 = vector.broadcast %cst_43 : f32 to vector<1x128xf32>
    %225 = arith.select %221, %223, %224 : vector<1x128xi1>, vector<1x128xf32>
    %226 = arith.addf %219, %225 : vector<1x128xf32>
    %c2_i32_44 = arith.constant 2 : i32
    %227 = vector.broadcast %c2_i32_44 : i32 to vector<1x128xi32>
    %228 = arith.cmpi eq, %213, %227 : vector<1x128xi32>
    %cst_45 = arith.constant 0.000000e+00 : f32
    %229 = vector.shape_cast %212 : vector<1x1xf32> to vector<1x1xf32>
    %230 = vector.broadcast %229 : vector<1x1xf32> to vector<1x128xf32>
    %231 = vector.broadcast %cst_45 : f32 to vector<1x128xf32>
    %232 = arith.select %228, %230, %231 : vector<1x128xi1>, vector<1x128xf32>
    %233 = arith.addf %226, %232 : vector<1x128xf32>
    %c0_46 = arith.constant 0 : index
    %c0_47 = arith.constant 0 : index
    %c0_48 = arith.constant 0 : index
    %234 = vector.load %arg5[%c0_46, %c0_47, %c0_48] : memref<1x1x128xf32, #tpu.memory_space<vmem>>, vector<1x1x128xf32>
    %235 = vector.shape_cast %234 : vector<1x1x128xf32> to vector<1x128xf32>
    %236 = vector.shape_cast %233 : vector<1x128xf32> to vector<1x1x128xf32>
    tpu.vector_store %arg5[%c0_46, %c0_47, %c0_48], %236 {strides = array<i32>} : memref<1x1x128xf32, #tpu.memory_space<vmem>>, vector<1x1x128xf32>,
    return
  }
  func.func @transform_0(%arg0: i32) -> (i32, i32) {
    %c0_i32 = arith.constant 0 : i32
    %c0_i32_0 = arith.constant 0 : i32
    return %arg0, %c0_i32 : i32, i32
  }
  func.func @transform_1(%arg0: i32) -> (i32, i32) {
    %c0_i32 = arith.constant 0 : i32
    %c0_i32_0 = arith.constant 0 : i32
    return %arg0, %c0_i32 : i32, i32
  }
  func.func @transform_2(%arg0: i32) -> (i32, i32) {
    %c0_i32 = arith.constant 0 : i32
    %c0_i32_0 = arith.constant 0 : i32
    %c0_i32_1 = arith.constant 0 : i32
    return %c0_i32, %c0_i32_0 : i32, i32
  }
  func.func @transform_3(%arg0: i32) -> (i32, i32, i32) {
    %c0_i32 = arith.constant 0 : i32
    %c0_i32_0 = arith.constant 0 : i32
    %c0_i32_1 = arith.constant 0 : i32
    return %arg0, %c0_i32, %c0_i32_0 : i32, i32, i32
  }
  func.func @transform_4(%arg0: i32) -> (i32, i32, i32) {
    %c0_i32 = arith.constant 0 : i32
    %c0_i32_0 = arith.constant 0 : i32
    %c0_i32_1 = arith.constant 0 : i32
    return %arg0, %c0_i32, %c0_i32_0 : i32, i32, i32
  }
}

</mosaic_0001>

<llo_original>
// kernel: tpu_custom_call.1
$region0: #{tpu_custom_call.1}
  #allocation0 [shape = 'u32[]', space=smem, size = 0x4, offset = 0x4, fixed_abs, tag = 'smem constant byte address 0x4 - core index']
  #allocation1 [shape = 'u32[144,128]{1,0:T(1,128)}', space=vmem, size = 0x12000, scoped, tag = 'internal scratch']
  %s0 = inlined_call_operand.vmem [shape: s32[256,8], index: 0, kind: input, shape index: {}]
  %s1 = inlined_call_operand.vmem [shape: s32[64,8], index: 1, kind: input, shape index: {}]
  %s2 = inlined_call_operand.vmem [shape: f32[272,32], index: 2, kind: input, shape index: {}]
  %s3 = inlined_call_operand.hbm [shape: f32[8,8,128], index: 3, kind: output, shape index: {0}]
  %s4 = inlined_call_operand.hbm [shape: f32[2,1,128], index: 4, kind: output, shape index: {1}]
  %5 = xla_tuple %s3, %s4
  %s6 = sld [smem:[#allocation0]]
  $region53: #{tpu_custom_call.1} parent=0
    _
  %s8 = ssub.s32 1, %s6
  %s9 = scalar_select 0, %s8, %s6
  $region1: #{tpu_custom_call.1} parent=0
    #allocation2 [shape = 'u8[32768]{0}', space=vmem, size = 0x8000, scoped, tag = 'output window, operand 0']
    #allocation3 [shape = 's32[2]{0}', space=sflag, size = 0x8, scoped, tag = 'scoped memory for tpu_custom_call.1']
    #allocation4 [shape = 'u8[1024]{0}', space=vmem, size = 0x400, scoped, tag = 'output window, operand 1']
    #allocation5 [shape = 's32[2]{0}', space=sflag, size = 0x8, scoped, tag = 'scoped memory for tpu_custom_call.1']
    %10 = vsyncpa [#allocation3], 0
    %s11 = scalar_lea.sflag [#allocation3], 1
    %12 = vsyncpa %s11, 0
    %13 = vsyncpa [#allocation5], 0
    %s14 = scalar_lea.sflag [#allocation5], 1
    %15 = vsyncpa %s14, 0
    loop: start=0, step=1, limit=4
    $region2: #{tpu_custom_call.1} parent=1 // loop_pre_header
      _
    $region3: #{tpu_custom_call.1} parent=1 // loop_header
      %s17 = sphi 0, %s21
      %p18 = scmp.ge.s32.totalorder %s17, 4
      %s27 = sphi 0, %s29
      %s30 = sphi 0, %s27
      %s31 = sphi 0, %s30
      %s47 = sphi 0, %s31
      %s53 = sphi 0, %s55
      %s56 = sphi 0, %s53
      %s57 = sphi 0, %s56
      %s73 = sphi 0, %s57
      %s77 = sphi 0, %s77
      %s79 = sphi 0, %s77
      %s80 = sphi 0, %s79
      %s94 = sphi 0, %s80
      %s100 = sphi 0, %s102
      %s103 = sphi 0, %s100
      %s104 = sphi 0, %s103
      %s120 = sphi 0, %s104
      %s126 = sphi 0, %s128
      %s129 = sphi 0, %s126
      %s130 = sphi 0, %s129
      %s146 = sphi 0, %s130
    $region4: #{tpu_custom_call.1} parent=1 // loop_header_branch
      %20 = sbr.rel (%p18) target = $region8
    $region5: #{tpu_custom_call.1} parent=1 // loop_body
      %s22 = ssub.s32 %s17, 1
      %s23 = ssub.s32 %s17, 2
      %s24 = sadd.s32 %s17, 1
      %s25 = ssub.s32 %s17, %s24
      %p26 = scmp.eq.s32.totalorder %s25, 0
      %s28 = sadd.s32 %s27, 1
      %s29 = scalar_select %p26, %s27, %s28
      %p32 = pneg %p26
      %p33 = scmp.eq.s32.totalorder %s17, 1
      %p34 = por %p32, %p33
      %p35 = scmp.ne.s32.totalorder %s27, %s30
      %p36 = scmp.eq.s32.totalorder %s17, 0
      %p37 = por %p35, %p36
      %p38 = scmp.ne.s32.totalorder %s27, %s30
      %p39 = scmp.eq.s32.totalorder %s22, 1
      %p40 = por %p38, %p39
      %p41 = scmp.ne.s32.totalorder %s30, %s31
      %p42 = scmp.eq.s32.totalorder %s22, 0
      %p43 = por %p41, %p42
      %p44 = scmp.ne.s32.totalorder %s30, %s31
      %p45 = scmp.eq.s32.totalorder %s23, 1
      %p46 = por %p44, %p45
      %p48 = scmp.ne.s32.totalorder %s31, %s47
      %p49 = scmp.eq.s32.totalorder %s23, 0
      %p50 = por %p48, %p49
      %s51 = ssub.s32 %s17, %s24
      %p52 = scmp.eq.s32.totalorder %s51, 0
      %s54 = sadd.s32 %s53, 1
      %s55 = scalar_select %p52, %s53, %s54
      %p58 = pneg %p52
      %p59 = scmp.eq.s32.totalorder %s17, 1
      %p60 = por %p58, %p59
      %p61 = scmp.ne.s32.totalorder %s53, %s56
      %p62 = scmp.eq.s32.totalorder %s17, 0
      %p63 = por %p61, %p62
      %p64 = scmp.ne.s32.totalorder %s53, %s56
      %p65 = scmp.eq.s32.totalorder %s22, 1
      %p66 = por %p64, %p65
      %p67 = scmp.ne.s32.totalorder %s56, %s57
      %p68 = scmp.eq.s32.totalorder %s22, 0
      %p69 = por %p67, %p68
      %p70 = scmp.ne.s32.totalorder %s56, %s57
      %p71 = scmp.eq.s32.totalorder %s23, 1
      %p72 = por %p70, %p71
      %p74 = scmp.ne.s32.totalorder %s57, %s73
      %p75 = scmp.eq.s32.totalorder %s23, 0
      %p76 = por %p74, %p75
      %s78 = sadd.s32 %s77, 1
      %p81 = scmp.eq.s32.totalorder %s17, 1
      %p82 = scmp.ne.s32.totalorder %s77, %s79
      %p83 = scmp.eq.s32.totalorder %s17, 0
      %p84 = por %p82, %p83
      %p85 = scmp.ne.s32.totalorder %s77, %s79
      %p86 = scmp.eq.s32.totalorder %s22, 1
      %p87 = por %p85, %p86
      %p88 = scmp.ne.s32.totalorder %s79, %s80
      %p89 = scmp.eq.s32.totalorder %s22, 0
      %p90 = por %p88, %p89
      %p91 = scmp.ne.s32.totalorder %s79, %s80
      %p92 = scmp.eq.s32.totalorder %s23, 1
      %p93 = por %p91, %p92
      %p95 = scmp.ne.s32.totalorder %s80, %s94
      %p96 = scmp.eq.s32.totalorder %s23, 0
      %p97 = por %p95, %p96
      %s98 = ssub.s32 %s17, %s24
      %p99 = scmp.eq.s32.totalorder %s98, 0
      %s101 = sadd.s32 %s100, 1
      %s102 = scalar_select %p99, %s100, %s101
      %p105 = pneg %p99
      %p106 = scmp.eq.s32.totalorder %s17, 1
      %p107 = por %p105, %p106
      %p108 = scmp.ne.s32.totalorder %s100, %s103
      %p109 = scmp.eq.s32.totalorder %s17, 0
      %p110 = por %p108, %p109
      %p111 = scmp.ne.s32.totalorder %s100, %s103
      %p112 = scmp.eq.s32.totalorder %s22, 1
      %p113 = por %p111, %p112
      %p114 = scmp.ne.s32.totalorder %s103, %s104
      %p115 = scmp.eq.s32.totalorder %s22, 0
      %p116 = por %p114, %p115
      %p117 = scmp.ne.s32.totalorder %s103, %s104
      %p118 = scmp.eq.s32.totalorder %s23, 1
      %p119 = por %p117, %p118
      %p121 = scmp.ne.s32.totalorder %s104, %s120
      %p122 = scmp.eq.s32.totalorder %s23, 0
      %p123 = por %p121, %p122
      %s124 = ssub.s32 %s17, %s24
      %p125 = scmp.eq.s32.totalorder %s124, 0
      %s127 = sadd.s32 %s126, 1
      %s128 = scalar_select %p125, %s126, %s127
      %p131 = pneg %p125
      %p132 = scmp.eq.s32.totalorder %s17, 1
      %p133 = por %p131, %p132
      %p134 = scmp.ne.s32.totalorder %s126, %s129
      %p135 = scmp.eq.s32.totalorder %s17, 0
      %p136 = por %p134, %p135
      %p137 = scmp.ne.s32.totalorder %s126, %s129
      %p138 = scmp.eq.s32.totalorder %s22, 1
      %p139 = por %p137, %p138
      %p140 = scmp.ne.s32.totalorder %s129, %s130
      %p141 = scmp.eq.s32.totalorder %s22, 0
      %p142 = por %p140, %p141
      %p143 = scmp.ne.s32.totalorder %s129, %s130
      %p144 = scmp.eq.s32.totalorder %s23, 1
      %p145 = por %p143, %p144
      %p147 = scmp.ne.s32.totalorder %s130, %s146
      %p148 = scmp.eq.s32.totalorder %s23, 0
      %p149 = por %p147, %p148
      %p150 = scmp.le.s32.totalorder 1, %s17
      %p151 = scmp.lt.s32.totalorder %s17, 3
      %p152 = pnand %p150, %p151
      %p153 = pneg %p152
      // Predicated region
      $region9: #{tpu_custom_call.1} parent=5 // pred_check
        _
      $region10: #{tpu_custom_call.1} parent=5 // pred_check_branch
        %155 = sbr.rel (%p152) target = $region12
      $region11: #{tpu_custom_call.1} parent=5 // pred_region
        %s156 = ssub.s32 %s17, 1
        // Predicated region
        $region13: #{tpu_custom_call.1} parent=11 // pred_check
          %p157 = pneg %p90
        $region14: #{tpu_custom_call.1} parent=11 // pred_check_branch
          %159 = sbr.rel (%p157) target = $region16
        $region15: #{tpu_custom_call.1} parent=11 // pred_region
          _
        $region16: #{tpu_custom_call.1} parent=11 // pred_fallthru
          _
      $region12: #{tpu_custom_call.1} parent=5 // pred_fallthru
        _
      %p160 = scmp.lt.s32.totalorder %s17, 2
      // Predicated region
      $region17: #{tpu_custom_call.1} parent=5 // pred_check
        %p161 = pneg %p160
      $region18: #{tpu_custom_call.1} parent=5 // pred_check_branch
        %163 = sbr.rel (%p161) target = $region20
      $region19: #{tpu_custom_call.1} parent=5 // pred_region
        // Predicated region
        $region21: #{tpu_custom_call.1} parent=19 // pred_check
          %p164 = pneg %p37
        $region22: #{tpu_custom_call.1} parent=19 // pred_check_branch
          %166 = sbr.rel (%p164) target = $region24
        $region23: #{tpu_custom_call.1} parent=19 // pred_region
          %s167 = smul.u32 16, %s17
          %p168 = scmp.lt.s32.totalorder %s167, 31
          %s169 = scalar_select %p168, %s167, 31
          %s170 = smul.addr %s169, 8
          %s171 = scalar_lea.vmem %s0, %s170
          %s172 = smul.u32 16, %s17
        $region24: #{tpu_custom_call.1} parent=19 // pred_fallthru
          _
        // Predicated region
        $region25: #{tpu_custom_call.1} parent=19 // pred_check
          %p173 = pneg %p63
        $region26: #{tpu_custom_call.1} parent=19 // pred_check_branch
          %175 = sbr.rel (%p173) target = $region28
        $region27: #{tpu_custom_call.1} parent=19 // pred_region
          %s176 = smul.u32 4, %s17
          %p177 = scmp.lt.s32.totalorder %s176, 7
          %s178 = scalar_select %p177, %s176, 7
          %s179 = smul.addr %s178, 8
          %s180 = scalar_lea.vmem %s1, %s179
          %s181 = smul.u32 4, %s17
        $region28: #{tpu_custom_call.1} parent=19 // pred_fallthru
          _
      $region20: #{tpu_custom_call.1} parent=5 // pred_fallthru
        _
      %p182 = scmp.le.s32.totalorder 1, %s17
      %p183 = scmp.lt.s32.totalorder %s17, 3
      %p184 = pnand %p182, %p183
      %p185 = pneg %p184
      // Predicated region
      $region29: #{tpu_custom_call.1} parent=5 // pred_check
        _
      $region30: #{tpu_custom_call.1} parent=5 // pred_check_branch
        %187 = sbr.rel (%p184) target = $region32
      $region31: #{tpu_custom_call.1} parent=5 // pred_region
        %s188 = ssub.s32 %s17, 1
        %s189 = smul.u32 16, %s22
        %p190 = scmp.lt.s32.totalorder %s189, 31
        %s191 = scalar_select %p190, %s189, 31
        %s192 = smul.addr %s191, 8
        %s193 = scalar_lea.vmem %s0, %s192
        %p194 = pneg %p43
        %p195 = pneg %p40
        %s196 = smul.u32 4, %s22
        %p197 = scmp.lt.s32.totalorder %s196, 7
        %s198 = scalar_select %p197, %s196, 7
        %s199 = smul.addr %s198, 8
        %s200 = scalar_lea.vmem %s1, %s199
        %p201 = pneg %p69
        %p202 = pneg %p66
        %p203 = pneg %p90
        %p204 = pneg %p87
        %p205 = pneg %p116
        %p206 = pneg %p113
        %s207 = sand.u32 %s103, 1
        %s208 = scalar_lea.sflag [#allocation3], %s207
        %s209 = sand.u32 %s103, 1
        %s210 = smul.addr %s209, 32
        %s211 = scalar_lea.vmem [#allocation2], %s210
        %p212 = pneg %p142
        %p213 = pneg %p139
        %s214 = sand.u32 %s129, 1
        %s215 = scalar_lea.sflag [#allocation5], %s214
        %s216 = sand.u32 %s129, 1
        %s217 = scalar_lea.vmem [#allocation4], %s216
        %s218 = smul.u32 16, %s22
        %p219 = scmp.lt.s32.totalorder %s218, 31
        %s220 = scalar_select %p219, %s218, 31
        %s221 = smul.addr %s220, 8
        %s222 = scalar_lea.vmem %s0, %s221
        %s223 = smul.u32 16, %s22
        %s224 = smul.u32 4, %s22
        %p225 = scmp.lt.s32.totalorder %s224, 7
        %s226 = scalar_select %p225, %s224, 7
        %s227 = smul.addr %s226, 8
        %s228 = scalar_lea.vmem %s1, %s227
        %s229 = smul.u32 4, %s22
        %s230 = smul.u32 4, %s22
        %v231 = vld [vmem:[%s2] sm:$0xff]
        %v232 = vld [vmem:[%s2 + $0x8] sm:$0xff]
        %v233 = vld [vmem:[%s2 + $0x10] sm:$0xff]
        %v234 = vld [vmem:[%s2 + $0x18] sm:$0xff]
        %v235 = vld [vmem:[%s2 + $0x20] sm:$0xff]
        %v236 = vld [vmem:[%s2 + $0x28] sm:$0xff]
        %v237 = vld [vmem:[%s2 + $0x30] sm:$0xff]
        %v238 = vld [vmem:[%s2 + $0x38] sm:$0xff]
        %v239 = vld [vmem:[%s2 + $0x40] sm:$0xff]
        %v240 = vld [vmem:[%s2 + $0x48] sm:$0xff]
        %v241 = vld [vmem:[%s2 + $0x50] sm:$0xff]
        %v242 = vld [vmem:[%s2 + $0x58] sm:$0xff]
        %v243 = vld [vmem:[%s2 + $0x60] sm:$0xff]
        %v244 = vld [vmem:[%s2 + $0x68] sm:$0xff]
        %v245 = vld [vmem:[%s2 + $0x70] sm:$0xff]
        %v246 = vld [vmem:[%s2 + $0x78] sm:$0xff]
        %v247 = vld [vmem:[%s2 + $0x80] sm:$0xff]
        %v248 = vld [vmem:[%s2 + $0x88] sm:$0xff]
        %v249 = vld [vmem:[%s2 + $0x90] sm:$0xff]
        %v250 = vld [vmem:[%s2 + $0x98] sm:$0xff]
        %v251 = vld [vmem:[%s2 + $0xa0] sm:$0xff]
        %v252 = vld [vmem:[%s2 + $0xa8] sm:$0xff]
        %v253 = vld [vmem:[%s2 + $0xb0] sm:$0xff]
        %v254 = vld [vmem:[%s2 + $0xb8] sm:$0xff]
        %v255 = vld [vmem:[%s2 + $0xc0] sm:$0xff]
        %v256 = vld [vmem:[%s2 + $0xc8] sm:$0xff]
        %v257 = vld [vmem:[%s2 + $0xd0] sm:$0xff]
        %v258 = vld [vmem:[%s2 + $0xd8] sm:$0xff]
        %v259 = vld [vmem:[%s2 + $0xe0] sm:$0xff]
        %v260 = vld [vmem:[%s2 + $0xe8] sm:$0xff]
        %v261 = vld [vmem:[%s2 + $0xf0] sm:$0xff]
        %v262 = vld [vmem:[%s2 + $0xf8] sm:$0xff]
        %v263 = vld [vmem:[%s2 + $0x100] sm:$0xff]
        %v264 = vld [vmem:[%s2 + $0x108] sm:$0xff]
        %v265 = vld [vmem:[%s222] sm:$0xff]
        %v266 = vld [vmem:[%s222 + $0x8] sm:$0xff]
        %v267 = vld [vmem:[%s222 + $0x10] sm:$0xff]
        %v268 = vld [vmem:[%s222 + $0x18] sm:$0xff]
        %v269 = vld [vmem:[%s222 + $0x20] sm:$0xff]
        %v270 = vld [vmem:[%s222 + $0x28] sm:$0xff]
        %v271 = vld [vmem:[%s222 + $0x30] sm:$0xff]
        %v272 = vld [vmem:[%s222 + $0x38] sm:$0xff]
        %v273 = vld [vmem:[%s222 + $0x40] sm:$0xff]
        %v274 = vld [vmem:[%s222 + $0x48] sm:$0xff]
        %v275 = vld [vmem:[%s222 + $0x50] sm:$0xff]
        %v276 = vld [vmem:[%s222 + $0x58] sm:$0xff]
        %v277 = vld [vmem:[%s222 + $0x60] sm:$0xff]
        %v278 = vld [vmem:[%s222 + $0x68] sm:$0xff]
        %v279 = vld [vmem:[%s222 + $0x70] sm:$0xff]
        %v280 = vld [vmem:[%s222 + $0x78] sm:$0xff]
        %v281 = vlaneseq
        %v282 = vand.u32 %v281, 127
        %283 = vset.pattern.permute.xlu0 0
        %284 = vperm.xlu0 %283, %v265
        %v285 = vpop.permute.xlu0 %284
        %286 = vset.pattern.permute.xlu0 0
        %287 = vperm.xlu0 %286, %v266
        %v288 = vpop.permute.xlu0 %287
        %289 = vset.pattern.permute.xlu0 0
        %290 = vperm.xlu0 %289, %v267
        %v291 = vpop.permute.xlu0 %290
        %292 = vset.pattern.permute.xlu0 0
        %293 = vperm.xlu0 %292, %v268
        %v294 = vpop.permute.xlu0 %293
        %295 = vset.pattern.permute.xlu0 0
        %296 = vperm.xlu0 %295, %v269
        %v297 = vpop.permute.xlu0 %296
        %298 = vset.pattern.permute.xlu0 0
        %299 = vperm.xlu0 %298, %v270
        %v300 = vpop.permute.xlu0 %299
        %301 = vset.pattern.permute.xlu0 0
        %302 = vperm.xlu0 %301, %v271
        %v303 = vpop.permute.xlu0 %302
        %304 = vset.pattern.permute.xlu0 0
        %305 = vperm.xlu0 %304, %v272
        %v306 = vpop.permute.xlu0 %305
        %307 = vset.pattern.permute.xlu0 0
        %308 = vperm.xlu0 %307, %v273
        %v309 = vpop.permute.xlu0 %308
        %310 = vset.pattern.permute.xlu0 0
        %311 = vperm.xlu0 %310, %v274
        %v312 = vpop.permute.xlu0 %311
        %313 = vset.pattern.permute.xlu0 0
        %314 = vperm.xlu0 %313, %v275
        %v315 = vpop.permute.xlu0 %314
        %316 = vset.pattern.permute.xlu0 0
        %317 = vperm.xlu0 %316, %v276
        %v318 = vpop.permute.xlu0 %317
        %319 = vset.pattern.permute.xlu0 0
        %320 = vperm.xlu0 %319, %v277
        %v321 = vpop.permute.xlu0 %320
        %322 = vset.pattern.permute.xlu0 0
        %323 = vperm.xlu0 %322, %v278
        %v324 = vpop.permute.xlu0 %323
        %325 = vset.pattern.permute.xlu0 0
        %326 = vperm.xlu0 %325, %v279
        %v327 = vpop.permute.xlu0 %326
        %328 = vset.pattern.permute.xlu0 0
        %329 = vperm.xlu0 %328, %v280
        %v330 = vpop.permute.xlu0 %329
        %vm331 = vcmp.eq.s32.totalorder %v282, %v285
        %vm332 = vcmp.eq.s32.totalorder %v282, %v288
        %vm333 = vcmp.eq.s32.totalorder %v282, %v291
        %vm334 = vcmp.eq.s32.totalorder %v282, %v294
        %vm335 = vcmp.eq.s32.totalorder %v282, %v297
        %vm336 = vcmp.eq.s32.totalorder %v282, %v300
        %vm337 = vcmp.eq.s32.totalorder %v282, %v303
        %vm338 = vcmp.eq.s32.totalorder %v282, %v306
        %vm339 = vcmp.eq.s32.totalorder %v282, %v309
        %vm340 = vcmp.eq.s32.totalorder %v282, %v312
        %vm341 = vcmp.eq.s32.totalorder %v282, %v315
        %vm342 = vcmp.eq.s32.totalorder %v282, %v318
        %vm343 = vcmp.eq.s32.totalorder %v282, %v321
        %vm344 = vcmp.eq.s32.totalorder %v282, %v324
        %vm345 = vcmp.eq.s32.totalorder %v282, %v327
        %vm346 = vcmp.eq.s32.totalorder %v282, %v330
        %v347 = vadd.s32 %v265, 32
        %v348 = vadd.s32 %v266, 32
        %v349 = vadd.s32 %v267, 32
        %v350 = vadd.s32 %v268, 32
        %v351 = vadd.s32 %v269, 32
        %v352 = vadd.s32 %v270, 32
        %v353 = vadd.s32 %v271, 32
        %v354 = vadd.s32 %v272, 32
        %v355 = vadd.s32 %v273, 32
        %v356 = vadd.s32 %v274, 32
        %v357 = vadd.s32 %v275, 32
        %v358 = vadd.s32 %v276, 32
        %v359 = vadd.s32 %v277, 32
        %v360 = vadd.s32 %v278, 32
        %v361 = vadd.s32 %v279, 32
        %v362 = vadd.s32 %v280, 32
        %363 = vset.pattern.permute.xlu0 1
        %364 = vperm.xlu0 %363, %v347
        %v365 = vpop.permute.xlu0 %364
        %366 = vset.pattern.permute.xlu0 1
        %367 = vperm.xlu0 %366, %v348
        %v368 = vpop.permute.xlu0 %367
        %369 = vset.pattern.permute.xlu0 1
        %370 = vperm.xlu0 %369, %v349
        %v371 = vpop.permute.xlu0 %370
        %372 = vset.pattern.permute.xlu0 1
        %373 = vperm.xlu0 %372, %v350
        %v374 = vpop.permute.xlu0 %373
        %375 = vset.pattern.permute.xlu0 1
        %376 = vperm.xlu0 %375, %v351
        %v377 = vpop.permute.xlu0 %376
        %378 = vset.pattern.permute.xlu0 1
        %379 = vperm.xlu0 %378, %v352
        %v380 = vpop.permute.xlu0 %379
        %381 = vset.pattern.permute.xlu0 1
        %382 = vperm.xlu0 %381, %v353
        %v383 = vpop.permute.xlu0 %382
        %384 = vset.pattern.permute.xlu0 1
        %385 = vperm.xlu0 %384, %v354
        %v386 = vpop.permute.xlu0 %385
        %387 = vset.pattern.permute.xlu0 1
        %388 = vperm.xlu0 %387, %v355
        %v389 = vpop.permute.xlu0 %388
        %390 = vset.pattern.permute.xlu0 1
        %391 = vperm.xlu0 %390, %v356
        %v392 = vpop.permute.xlu0 %391
        %393 = vset.pattern.permute.xlu0 1
        %394 = vperm.xlu0 %393, %v357
        %v395 = vpop.permute.xlu0 %394
        %396 = vset.pattern.permute.xlu0 1
        %397 = vperm.xlu0 %396, %v358
        %v398 = vpop.permute.xlu0 %397
        %399 = vset.pattern.permute.xlu0 1
        %400 = vperm.xlu0 %399, %v359
        %v401 = vpop.permute.xlu0 %400
        %402 = vset.pattern.permute.xlu0 1
        %403 = vperm.xlu0 %402, %v360
        %v404 = vpop.permute.xlu0 %403
        %405 = vset.pattern.permute.xlu0 1
        %406 = vperm.xlu0 %405, %v361
        %v407 = vpop.permute.xlu0 %406
        %408 = vset.pattern.permute.xlu0 1
        %409 = vperm.xlu0 %408, %v362
        %v410 = vpop.permute.xlu0 %409
        %vm411 = vcmp.eq.s32.totalorder %v282, %v365
        %vm412 = vcmp.eq.s32.totalorder %v282, %v368
        %vm413 = vcmp.eq.s32.totalorder %v282, %v371
        %vm414 = vcmp.eq.s32.totalorder %v282, %v374
        %vm415 = vcmp.eq.s32.totalorder %v282, %v377
        %vm416 = vcmp.eq.s32.totalorder %v282, %v380
        %vm417 = vcmp.eq.s32.totalorder %v282, %v383
        %vm418 = vcmp.eq.s32.totalorder %v282, %v386
        %vm419 = vcmp.eq.s32.totalorder %v282, %v389
        %vm420 = vcmp.eq.s32.totalorder %v282, %v392
        %vm421 = vcmp.eq.s32.totalorder %v282, %v395
        %vm422 = vcmp.eq.s32.totalorder %v282, %v398
        %vm423 = vcmp.eq.s32.totalorder %v282, %v401
        %vm424 = vcmp.eq.s32.totalorder %v282, %v404
        %vm425 = vcmp.eq.s32.totalorder %v282, %v407
        %vm426 = vcmp.eq.s32.totalorder %v282, %v410
        %vm427 = vmor %vm331, %vm411
        %vm428 = vmor %vm332, %vm412
        %vm429 = vmor %vm333, %vm413
        %vm430 = vmor %vm334, %vm414
        %vm431 = vmor %vm335, %vm415
        %vm432 = vmor %vm336, %vm416
        %vm433 = vmor %vm337, %vm417
        %vm434 = vmor %vm338, %vm418
        %vm435 = vmor %vm339, %vm419
        %vm436 = vmor %vm340, %vm420
        %vm437 = vmor %vm341, %vm421
        %vm438 = vmor %vm342, %vm422
        %vm439 = vmor %vm343, %vm423
        %vm440 = vmor %vm344, %vm424
        %vm441 = vmor %vm345, %vm425
        %vm442 = vmor %vm346, %vm426
        %v443 = vadd.s32 %v265, 36
        %v444 = vadd.s32 %v266, 36
        %v445 = vadd.s32 %v267, 36
        %v446 = vadd.s32 %v268, 36
        %v447 = vadd.s32 %v269, 36
        %v448 = vadd.s32 %v270, 36
        %v449 = vadd.s32 %v271, 36
        %v450 = vadd.s32 %v272, 36
        %v451 = vadd.s32 %v273, 36
        %v452 = vadd.s32 %v274, 36
        %v453 = vadd.s32 %v275, 36
        %v454 = vadd.s32 %v276, 36
        %v455 = vadd.s32 %v277, 36
        %v456 = vadd.s32 %v278, 36
        %v457 = vadd.s32 %v279, 36
        %v458 = vadd.s32 %v280, 36
        %459 = vset.pattern.permute.xlu0 2
        %460 = vperm.xlu0 %459, %v443
        %v461 = vpop.permute.xlu0 %460
        %462 = vset.pattern.permute.xlu0 2
        %463 = vperm.xlu0 %462, %v444
        %v464 = vpop.permute.xlu0 %463
        %465 = vset.pattern.permute.xlu0 2
        %466 = vperm.xlu0 %465, %v445
        %v467 = vpop.permute.xlu0 %466
        %468 = vset.pattern.permute.xlu0 2
        %469 = vperm.xlu0 %468, %v446
        %v470 = vpop.permute.xlu0 %469
        %471 = vset.pattern.permute.xlu0 2
        %472 = vperm.xlu0 %471, %v447
        %v473 = vpop.permute.xlu0 %472
        %474 = vset.pattern.permute.xlu0 2
        %475 = vperm.xlu0 %474, %v448
        %v476 = vpop.permute.xlu0 %475
        %477 = vset.pattern.permute.xlu0 2
        %478 = vperm.xlu0 %477, %v449
        %v479 = vpop.permute.xlu0 %478
        %480 = vset.pattern.permute.xlu0 2
        %481 = vperm.xlu0 %480, %v450
        %v482 = vpop.permute.xlu0 %481
        %483 = vset.pattern.permute.xlu0 2
        %484 = vperm.xlu0 %483, %v451
        %v485 = vpop.permute.xlu0 %484
        %486 = vset.pattern.permute.xlu0 2
        %487 = vperm.xlu0 %486, %v452
        %v488 = vpop.permute.xlu0 %487
        %489 = vset.pattern.permute.xlu0 2
        %490 = vperm.xlu0 %489, %v453
        %v491 = vpop.permute.xlu0 %490
        %492 = vset.pattern.permute.xlu0 2
        %493 = vperm.xlu0 %492, %v454
        %v494 = vpop.permute.xlu0 %493
        %495 = vset.pattern.permute.xlu0 2
        %496 = vperm.xlu0 %495, %v455
        %v497 = vpop.permute.xlu0 %496
        %498 = vset.pattern.permute.xlu0 2
        %499 = vperm.xlu0 %498, %v456
        %v500 = vpop.permute.xlu0 %499
        %501 = vset.pattern.permute.xlu0 2
        %502 = vperm.xlu0 %501, %v457
        %v503 = vpop.permute.xlu0 %502
        %504 = vset.pattern.permute.xlu0 2
        %505 = vperm.xlu0 %504, %v458
        %v506 = vpop.permute.xlu0 %505
        %vm507 = vcmp.eq.s32.totalorder %v282, %v461
        %vm508 = vcmp.eq.s32.totalorder %v282, %v464
        %vm509 = vcmp.eq.s32.totalorder %v282, %v467
        %vm510 = vcmp.eq.s32.totalorder %v282, %v470
        %vm511 = vcmp.eq.s32.totalorder %v282, %v473
        %vm512 = vcmp.eq.s32.totalorder %v282, %v476
        %vm513 = vcmp.eq.s32.totalorder %v282, %v479
        %vm514 = vcmp.eq.s32.totalorder %v282, %v482
        %vm515 = vcmp.eq.s32.totalorder %v282, %v485
        %vm516 = vcmp.eq.s32.totalorder %v282, %v488
        %vm517 = vcmp.eq.s32.totalorder %v282, %v491
        %vm518 = vcmp.eq.s32.totalorder %v282, %v494
        %vm519 = vcmp.eq.s32.totalorder %v282, %v497
        %vm520 = vcmp.eq.s32.totalorder %v282, %v500
        %vm521 = vcmp.eq.s32.totalorder %v282, %v503
        %vm522 = vcmp.eq.s32.totalorder %v282, %v506
        %vm523 = vmor %vm427, %vm507
        %vm524 = vmor %vm428, %vm508
        %vm525 = vmor %vm429, %vm509
        %vm526 = vmor %vm430, %vm510
        %vm527 = vmor %vm431, %vm511
        %vm528 = vmor %vm432, %vm512
        %vm529 = vmor %vm433, %vm513
        %vm530 = vmor %vm434, %vm514
        %vm531 = vmor %vm435, %vm515
        %vm532 = vmor %vm436, %vm516
        %vm533 = vmor %vm437, %vm517
        %vm534 = vmor %vm438, %vm518
        %vm535 = vmor %vm439, %vm519
        %vm536 = vmor %vm440, %vm520
        %vm537 = vmor %vm441, %vm521
        %vm538 = vmor %vm442, %vm522
        %v539 = vsel %vm523, 1, 0
        %v540 = vsel %vm524, 1, 0
        %v541 = vsel %vm525, 1, 0
        %v542 = vsel %vm526, 1, 0
        %v543 = vsel %vm527, 1, 0
        %v544 = vsel %vm528, 1, 0
        %v545 = vsel %vm529, 1, 0
        %v546 = vsel %vm530, 1, 0
        %v547 = vsel %vm531, 1, 0
        %v548 = vsel %vm532, 1, 0
        %v549 = vsel %vm533, 1, 0
        %v550 = vsel %vm534, 1, 0
        %v551 = vsel %vm535, 1, 0
        %v552 = vsel %vm536, 1, 0
        %v553 = vsel %vm537, 1, 0
        %v554 = vsel %vm538, 1, 0
        %v555 = vcvt.s32.f32 %v539
        %v556 = vcvt.s32.f32 %v540
        %v557 = vcvt.s32.f32 %v541
        %v558 = vcvt.s32.f32 %v542
        %v559 = vcvt.s32.f32 %v543
        %v560 = vcvt.s32.f32 %v544
        %v561 = vcvt.s32.f32 %v545
        %v562 = vcvt.s32.f32 %v546
        %v563 = vcvt.s32.f32 %v547
        %v564 = vcvt.s32.f32 %v548
        %v565 = vcvt.s32.f32 %v549
        %v566 = vcvt.s32.f32 %v550
        %v567 = vcvt.s32.f32 %v551
        %v568 = vcvt.s32.f32 %v552
        %v569 = vcvt.s32.f32 %v553
        %v570 = vcvt.s32.f32 %v554
        %571 = vmatprep.subr.mxu0 0.0
        %572 = vmatpush1.msra.mxu0 %v246
        %573 = vmatprep.subr.mxu0 0.0
        %574 = vmatpush1.msra.mxu0 %v245
        %575 = vmatprep.subr.mxu0 0.0
        %576 = vmatpush1.msra.mxu0 %v244
        %577 = vmatprep.subr.mxu0 0.0
        %578 = vmatpush1.msra.mxu0 %v243
        %579 = vmatprep.subr.mxu0 0.0
        %580 = vmatpush1.msra.mxu0 %v242
        %581 = vmatprep.subr.mxu0 0.0
        %582 = vmatpush1.msra.mxu0 %v241
        %583 = vmatprep.subr.mxu0 0.0
        %584 = vmatpush1.msra.mxu0 %v240
        %585 = vmatprep.subr.mxu0 0.0
        %586 = vmatpush1.msra.mxu0 %v239
        %587 = vmatprep.subr.mxu0 0.0
        %588 = vmatpush1.msra.mxu0 %v238
        %589 = vmatprep.subr.mxu0 0.0
        %590 = vmatpush1.msra.mxu0 %v237
        %591 = vmatprep.subr.mxu0 0.0
        %592 = vmatpush1.msra.mxu0 %v236
        %593 = vmatprep.subr.mxu0 0.0
        %594 = vmatpush1.msra.mxu0 %v235
        %595 = vmatprep.subr.mxu0 0.0
        %596 = vmatpush1.msra.mxu0 %v234
        %597 = vmatprep.subr.mxu0 0.0
        %598 = vmatpush1.msra.mxu0 %v233
        %599 = vmatprep.subr.mxu0 0.0
        %600 = vmatpush1.msra.mxu0 %v232
        %601 = vmatprep.subr.mxu0 0.0
        %602 = vmatpush1.msra.mxu0 %v231
        %603 = vmatprep.subr.mxu0 0.0
        %604 = vmatpush2.msra.mxu0 0.0
        %605 = vmatprep.subr.mxu0 0.0
        %606 = vmatpush2.msra.mxu0 0.0
        %607 = vmatprep.subr.mxu0 0.0
        %608 = vmatpush2.msra.mxu0 0.0
        %609 = vmatprep.subr.mxu0 0.0
        %610 = vmatpush2.msra.mxu0 0.0
        %611 = vmatprep.subr.mxu0 0.0
        %612 = vmatpush2.msra.mxu0 0.0
        %613 = vmatprep.subr.mxu0 0.0
        %614 = vmatpush2.msra.mxu0 0.0
        %615 = vmatprep.subr.mxu0 0.0
        %616 = vmatpush2.msra.mxu0 0.0
        %617 = vmatprep.subr.mxu0 0.0
        %618 = vmatpush2.msra.mxu0 0.0
        %619 = vmatprep.subr.mxu0 0.0
        %620 = vmatpush2.msra.mxu0 0.0
        %621 = vmatprep.subr.mxu0 0.0
        %622 = vmatpush2.msra.mxu0 0.0
        %623 = vmatprep.subr.mxu0 0.0
        %624 = vmatpush2.msra.mxu0 0.0
        %625 = vmatprep.subr.mxu0 0.0
        %626 = vmatpush2.msra.mxu0 0.0
        %627 = vmatprep.subr.mxu0 0.0
        %628 = vmatpush2.msra.mxu0 0.0
        %629 = vmatprep.subr.mxu0 0.0
        %630 = vmatpush2.msra.mxu0 0.0
        %631 = vmatprep.subr.mxu0 0.0
        %632 = vmatpush2.msra.mxu0 0.0
        %633 = vmatprep.subr.mxu0 0.0
        %634 = vmatpush2.msra.mxu0 0.0
        %635 = vmatprep.mubr.f32.mxu0 0.0
        %636 = vmatmul.mubr.f32.gmra.mxu0 %v555
        %v637 = vpop.f32.mrf.mxu0
        %v638 = vadd.f32 0.0, %v637
        %v639 = vpop.f32.mrf.mxu0
        %640 = vmatprep.mubr.f32.mxu0 0.0
        %641 = vmatmul.mubr.f32.gmra.mxu0 %v556
        %v642 = vpop.f32.mrf.mxu0
        %v643 = vadd.f32 0.0, %v642
        %v644 = vpop.f32.mrf.mxu0
        %645 = vmatprep.mubr.f32.mxu0 0.0
        %646 = vmatmul.mubr.f32.gmra.mxu0 %v557
        %v647 = vpop.f32.mrf.mxu0
        %v648 = vadd.f32 0.0, %v647
        %v649 = vpop.f32.mrf.mxu0
        %650 = vmatprep.mubr.f32.mxu0 0.0
        %651 = vmatmul.mubr.f32.gmra.mxu0 %v558
        %v652 = vpop.f32.mrf.mxu0
        %v653 = vadd.f32 0.0, %v652
        %v654 = vpop.f32.mrf.mxu0
        %655 = vmatprep.mubr.f32.mxu0 0.0
        %656 = vmatmul.mubr.f32.gmra.mxu0 %v559
        %v657 = vpop.f32.mrf.mxu0
        %v658 = vadd.f32 0.0, %v657
        %v659 = vpop.f32.mrf.mxu0
        %660 = vmatprep.mubr.f32.mxu0 0.0
        %661 = vmatmul.mubr.f32.gmra.mxu0 %v560
        %v662 = vpop.f32.mrf.mxu0
        %v663 = vadd.f32 0.0, %v662
        %v664 = vpop.f32.mrf.mxu0
        %665 = vmatprep.mubr.f32.mxu0 0.0
        %666 = vmatmul.mubr.f32.gmra.mxu0 %v561
        %v667 = vpop.f32.mrf.mxu0
        %v668 = vadd.f32 0.0, %v667
        %v669 = vpop.f32.mrf.mxu0
        %670 = vmatprep.mubr.f32.mxu0 0.0
        %671 = vmatmul.mubr.f32.gmra.mxu0 %v562
        %v672 = vpop.f32.mrf.mxu0
        %v673 = vadd.f32 0.0, %v672
        %v674 = vpop.f32.mrf.mxu0
        %675 = vmatprep.mubr.f32.mxu0 0.0
        %676 = vmatmul.mubr.f32.gmra.mxu0 %v563
        %v677 = vpop.f32.mrf.mxu0
        %v678 = vadd.f32 0.0, %v677
        %v679 = vpop.f32.mrf.mxu0
        %680 = vmatprep.mubr.f32.mxu0 0.0
        %681 = vmatmul.mubr.f32.gmra.mxu0 %v564
        %v682 = vpop.f32.mrf.mxu0
        %v683 = vadd.f32 0.0, %v682
        %v684 = vpop.f32.mrf.mxu0
        %685 = vmatprep.mubr.f32.mxu0 0.0
        %686 = vmatmul.mubr.f32.gmra.mxu0 %v565
        %v687 = vpop.f32.mrf.mxu0
        %v688 = vadd.f32 0.0, %v687
        %v689 = vpop.f32.mrf.mxu0
        %690 = vmatprep.mubr.f32.mxu0 0.0
        %691 = vmatmul.mubr.f32.gmra.mxu0 %v566
        %v692 = vpop.f32.mrf.mxu0
        %v693 = vadd.f32 0.0, %v692
        %v694 = vpop.f32.mrf.mxu0
        %695 = vmatprep.mubr.f32.mxu0 0.0
        %696 = vmatmul.mubr.f32.gmra.mxu0 %v567
        %v697 = vpop.f32.mrf.mxu0
        %v698 = vadd.f32 0.0, %v697
        %v699 = vpop.f32.mrf.mxu0
        %700 = vmatprep.mubr.f32.mxu0 0.0
        %701 = vmatmul.mubr.f32.gmra.mxu0 %v568
        %v702 = vpop.f32.mrf.mxu0
        %v703 = vadd.f32 0.0, %v702
        %v704 = vpop.f32.mrf.mxu0
        %705 = vmatprep.mubr.f32.mxu0 0.0
        %706 = vmatmul.mubr.f32.gmra.mxu0 %v569
        %v707 = vpop.f32.mrf.mxu0
        %v708 = vadd.f32 0.0, %v707
        %v709 = vpop.f32.mrf.mxu0
        %710 = vmatprep.mubr.f32.mxu0 0.0
        %711 = vmatmul.mubr.f32.gmra.mxu0 %v570
        %v712 = vpop.f32.mrf.mxu0
        %v713 = vadd.f32 0.0, %v712
        %v714 = vpop.f32.mrf.mxu0
        %715 = vdwg.mxu0
        %v716 = vlaneseq
        %v717 = vshrl.u32 %v716, 7
        %v718 = vmul.u32 %v717, 3
        %vm719 = vcmp.ge.s32.totalorder %v282, %v718
        %v720 = vadd.s32 %v718, 3
        %vm721 = vcmp.lt.s32.totalorder %v282, %v720
        %vm722 = vmand %vm719, %vm721
        %vm723 = vcmp.lt.s32.totalorder %v282, 24
        %vm724 = vmand %vm722, %vm723
        %v725 = vsel %vm724, 1, 0
        %v726 = vcvt.s32.f32 %v725
        %vm727 = vcmask 261120
        %v729 = vsel %vm727, %v726, 0
        %731 = vmatprep.subr.mxu0 0.0
        %732 = vmatpush1.msra.mxu0 0.0
        %733 = vmatprep.subr.mxu0 0.0
        %734 = vmatpush1.msra.mxu0 0.0
        %735 = vmatprep.subr.mxu0 0.0
        %736 = vmatpush1.msra.mxu0 0.0
        %737 = vmatprep.subr.mxu0 0.0
        %738 = vmatpush1.msra.mxu0 0.0
        %739 = vmatprep.subr.mxu0 0.0
        %740 = vmatpush1.msra.mxu0 0.0
        %741 = vmatprep.subr.mxu0 0.0
        %742 = vmatpush1.msra.mxu0 0.0
        %743 = vmatprep.subr.mxu0 0.0
        %744 = vmatpush1.msra.mxu0 0.0
        %745 = vmatprep.subr.mxu0 0.0
        %746 = vmatpush1.msra.mxu0 0.0
        %747 = vmatprep.subr.mxu0 0.0
        %748 = vmatpush1.msra.mxu0 0.0
        %749 = vmatprep.subr.mxu0 0.0
        %750 = vmatpush1.msra.mxu0 0.0
        %751 = vmatprep.subr.mxu0 0.0
        %752 = vmatpush1.msra.mxu0 0.0
        %753 = vmatprep.subr.mxu0 0.0
        %754 = vmatpush1.msra.mxu0 0.0
        %755 = vmatprep.subr.mxu0 0.0
        %756 = vmatpush1.msra.mxu0 %v653
        %757 = vmatprep.subr.mxu0 0.0
        %758 = vmatpush1.msra.mxu0 %v648
        %759 = vmatprep.subr.mxu0 0.0
        %760 = vmatpush1.msra.mxu0 %v643
        %761 = vmatprep.subr.mxu0 0.0
        %762 = vmatpush1.msra.mxu0 %v638
        %763 = vmatprep.subr.mxu0 0.0
        %764 = vmatpush2.msra.mxu0 0.0
        %765 = vmatprep.subr.mxu0 0.0
        %766 = vmatpush2.msra.mxu0 0.0
        %767 = vmatprep.subr.mxu0 0.0
        %768 = vmatpush2.msra.mxu0 0.0
        %769 = vmatprep.subr.mxu0 0.0
        %770 = vmatpush2.msra.mxu0 0.0
        %771 = vmatprep.subr.mxu0 0.0
        %772 = vmatpush2.msra.mxu0 0.0
        %773 = vmatprep.subr.mxu0 0.0
        %774 = vmatpush2.msra.mxu0 0.0
        %775 = vmatprep.subr.mxu0 0.0
        %776 = vmatpush2.msra.mxu0 0.0
        %777 = vmatprep.subr.mxu0 0.0
        %778 = vmatpush2.msra.mxu0 0.0
        %779 = vmatprep.subr.mxu0 0.0
        %780 = vmatpush2.msra.mxu0 0.0
        %781 = vmatprep.subr.mxu0 0.0
        %782 = vmatpush2.msra.mxu0 0.0
        %783 = vmatprep.subr.mxu0 0.0
        %784 = vmatpush2.msra.mxu0 0.0
        %785 = vmatprep.subr.mxu0 0.0
        %786 = vmatpush2.msra.mxu0 0.0
        %787 = vmatprep.subr.mxu0 0.0
        %788 = vmatpush2.msra.mxu0 0.0
        %789 = vmatprep.subr.mxu0 0.0
        %790 = vmatpush2.msra.mxu0 0.0
        %791 = vmatprep.subr.mxu0 0.0
        %792 = vmatpush2.msra.mxu0 0.0
        %793 = vmatprep.subr.mxu0 0.0
        %794 = vmatpush2.msra.mxu0 0.0
        %795 = vmatprep.mubr.f32.mxu0 0.0
        %796 = vmatmul.mubr.f32.gmra.mxu0 %v729
        %v797 = vpop.f32.mrf.mxu0
        %v798 = vadd.f32 0.0, %v797
        %v799 = vpop.f32.mrf.mxu0
        %800 = vdwg.mxu0
        %801 = vmatprep.subr.mxu0 0.0
        %802 = vmatpush1.msra.mxu0 0.0
        %803 = vmatprep.subr.mxu0 0.0
        %804 = vmatpush1.msra.mxu0 0.0
        %805 = vmatprep.subr.mxu0 0.0
        %806 = vmatpush1.msra.mxu0 0.0
        %807 = vmatprep.subr.mxu0 0.0
        %808 = vmatpush1.msra.mxu0 0.0
        %809 = vmatprep.subr.mxu0 0.0
        %810 = vmatpush1.msra.mxu0 0.0
        %811 = vmatprep.subr.mxu0 0.0
        %812 = vmatpush1.msra.mxu0 0.0
        %813 = vmatprep.subr.mxu0 0.0
        %814 = vmatpush1.msra.mxu0 0.0
        %815 = vmatprep.subr.mxu0 0.0
        %816 = vmatpush1.msra.mxu0 0.0
        %817 = vmatprep.subr.mxu0 0.0
        %818 = vmatpush1.msra.mxu0 0.0
        %819 = vmatprep.subr.mxu0 0.0
        %820 = vmatpush1.msra.mxu0 0.0
        %821 = vmatprep.subr.mxu0 0.0
        %822 = vmatpush1.msra.mxu0 0.0
        %823 = vmatprep.subr.mxu0 0.0
        %824 = vmatpush1.msra.mxu0 0.0
        %825 = vmatprep.subr.mxu0 0.0
        %826 = vmatpush1.msra.mxu0 %v673
        %827 = vmatprep.subr.mxu0 0.0
        %828 = vmatpush1.msra.mxu0 %v668
        %829 = vmatprep.subr.mxu0 0.0
        %830 = vmatpush1.msra.mxu0 %v663
        %831 = vmatprep.subr.mxu0 0.0
        %832 = vmatpush1.msra.mxu0 %v658
        %833 = vmatprep.subr.mxu0 0.0
        %834 = vmatpush2.msra.mxu0 0.0
        %835 = vmatprep.subr.mxu0 0.0
        %836 = vmatpush2.msra.mxu0 0.0
        %837 = vmatprep.subr.mxu0 0.0
        %838 = vmatpush2.msra.mxu0 0.0
        %839 = vmatprep.subr.mxu0 0.0
        %840 = vmatpush2.msra.mxu0 0.0
        %841 = vmatprep.subr.mxu0 0.0
        %842 = vmatpush2.msra.mxu0 0.0
        %843 = vmatprep.subr.mxu0 0.0
        %844 = vmatpush2.msra.mxu0 0.0
        %845 = vmatprep.subr.mxu0 0.0
        %846 = vmatpush2.msra.mxu0 0.0
        %847 = vmatprep.subr.mxu0 0.0
        %848 = vmatpush2.msra.mxu0 0.0
        %849 = vmatprep.subr.mxu0 0.0
        %850 = vmatpush2.msra.mxu0 0.0
        %851 = vmatprep.subr.mxu0 0.0
        %852 = vmatpush2.msra.mxu0 0.0
        %853 = vmatprep.subr.mxu0 0.0
        %854 = vmatpush2.msra.mxu0 0.0
        %855 = vmatprep.subr.mxu0 0.0
        %856 = vmatpush2.msra.mxu0 0.0
        %857 = vmatprep.subr.mxu0 0.0
        %858 = vmatpush2.msra.mxu0 0.0
        %859 = vmatprep.subr.mxu0 0.0
        %860 = vmatpush2.msra.mxu0 0.0
        %861 = vmatprep.subr.mxu0 0.0
        %862 = vmatpush2.msra.mxu0 0.0
        %863 = vmatprep.subr.mxu0 0.0
        %864 = vmatpush2.msra.mxu0 0.0
        %865 = vmatprep.mubr.f32.mxu0 0.0
        %866 = vmatmul.mubr.f32.gmra.mxu0 %v729
        %v867 = vpop.f32.mrf.mxu0
        %v868 = vadd.f32 0.0, %v867
        %v869 = vpop.f32.mrf.mxu0
        %870 = vdwg.mxu0
        %871 = vmatprep.subr.mxu0 0.0
        %872 = vmatpush1.msra.mxu0 0.0
        %873 = vmatprep.subr.mxu0 0.0
        %874 = vmatpush1.msra.mxu0 0.0
        %875 = vmatprep.subr.mxu0 0.0
        %876 = vmatpush1.msra.mxu0 0.0
        %877 = vmatprep.subr.mxu0 0.0
        %878 = vmatpush1.msra.mxu0 0.0
        %879 = vmatprep.subr.mxu0 0.0
        %880 = vmatpush1.msra.mxu0 0.0
        %881 = vmatprep.subr.mxu0 0.0
        %882 = vmatpush1.msra.mxu0 0.0
        %883 = vmatprep.subr.mxu0 0.0
        %884 = vmatpush1.msra.mxu0 0.0
        %885 = vmatprep.subr.mxu0 0.0
        %886 = vmatpush1.msra.mxu0 0.0
        %887 = vmatprep.subr.mxu0 0.0
        %888 = vmatpush1.msra.mxu0 0.0
        %889 = vmatprep.subr.mxu0 0.0
        %890 = vmatpush1.msra.mxu0 0.0
        %891 = vmatprep.subr.mxu0 0.0
        %892 = vmatpush1.msra.mxu0 0.0
        %893 = vmatprep.subr.mxu0 0.0
        %894 = vmatpush1.msra.mxu0 0.0
        %895 = vmatprep.subr.mxu0 0.0
        %896 = vmatpush1.msra.mxu0 %v693
        %897 = vmatprep.subr.mxu0 0.0
        %898 = vmatpush1.msra.mxu0 %v688
        %899 = vmatprep.subr.mxu0 0.0
        %900 = vmatpush1.msra.mxu0 %v683
        %901 = vmatprep.subr.mxu0 0.0
        %902 = vmatpush1.msra.mxu0 %v678
        %903 = vmatprep.subr.mxu0 0.0
        %904 = vmatpush2.msra.mxu0 0.0
        %905 = vmatprep.subr.mxu0 0.0
        %906 = vmatpush2.msra.mxu0 0.0
        %907 = vmatprep.subr.mxu0 0.0
        %908 = vmatpush2.msra.mxu0 0.0
        %909 = vmatprep.subr.mxu0 0.0
        %910 = vmatpush2.msra.mxu0 0.0
        %911 = vmatprep.subr.mxu0 0.0
        %912 = vmatpush2.msra.mxu0 0.0
        %913 = vmatprep.subr.mxu0 0.0
        %914 = vmatpush2.msra.mxu0 0.0
        %915 = vmatprep.subr.mxu0 0.0
        %916 = vmatpush2.msra.mxu0 0.0
        %917 = vmatprep.subr.mxu0 0.0
        %918 = vmatpush2.msra.mxu0 0.0
        %919 = vmatprep.subr.mxu0 0.0
        %920 = vmatpush2.msra.mxu0 0.0
        %921 = vmatprep.subr.mxu0 0.0
        %922 = vmatpush2.msra.mxu0 0.0
        %923 = vmatprep.subr.mxu0 0.0
        %924 = vmatpush2.msra.mxu0 0.0
        %925 = vmatprep.subr.mxu0 0.0
        %926 = vmatpush2.msra.mxu0 0.0
        %927 = vmatprep.subr.mxu0 0.0
        %928 = vmatpush2.msra.mxu0 0.0
        %929 = vmatprep.subr.mxu0 0.0
        %930 = vmatpush2.msra.mxu0 0.0
        %931 = vmatprep.subr.mxu0 0.0
        %932 = vmatpush2.msra.mxu0 0.0
        %933 = vmatprep.subr.mxu0 0.0
        %934 = vmatpush2.msra.mxu0 0.0
        %935 = vmatprep.mubr.f32.mxu0 0.0
        %936 = vmatmul.mubr.f32.gmra.mxu0 %v729
        %v937 = vpop.f32.mrf.mxu0
        %v938 = vadd.f32 0.0, %v937
        %v939 = vpop.f32.mrf.mxu0
        %940 = vdwg.mxu0
        %941 = vmatprep.subr.mxu0 0.0
        %942 = vmatpush1.msra.mxu0 0.0
        %943 = vmatprep.subr.mxu0 0.0
        %944 = vmatpush1.msra.mxu0 0.0
        %945 = vmatprep.subr.mxu0 0.0
        %946 = vmatpush1.msra.mxu0 0.0
        %947 = vmatprep.subr.mxu0 0.0
        %948 = vmatpush1.msra.mxu0 0.0
        %949 = vmatprep.subr.mxu0 0.0
        %950 = vmatpush1.msra.mxu0 0.0
        %951 = vmatprep.subr.mxu0 0.0
        %952 = vmatpush1.msra.mxu0 0.0
        %953 = vmatprep.subr.mxu0 0.0
        %954 = vmatpush1.msra.mxu0 0.0
        %955 = vmatprep.subr.mxu0 0.0
        %956 = vmatpush1.msra.mxu0 0.0
        %957 = vmatprep.subr.mxu0 0.0
        %958 = vmatpush1.msra.mxu0 0.0
        %959 = vmatprep.subr.mxu0 0.0
        %960 = vmatpush1.msra.mxu0 0.0
        %961 = vmatprep.subr.mxu0 0.0
        %962 = vmatpush1.msra.mxu0 0.0
        %963 = vmatprep.subr.mxu0 0.0
        %964 = vmatpush1.msra.mxu0 0.0
        %965 = vmatprep.subr.mxu0 0.0
        %966 = vmatpush1.msra.mxu0 %v713
        %967 = vmatprep.subr.mxu0 0.0
        %968 = vmatpush1.msra.mxu0 %v708
        %969 = vmatprep.subr.mxu0 0.0
        %970 = vmatpush1.msra.mxu0 %v703
        %971 = vmatprep.subr.mxu0 0.0
        %972 = vmatpush1.msra.mxu0 %v698
        %973 = vmatprep.subr.mxu0 0.0
        %974 = vmatpush2.msra.mxu0 0.0
        %975 = vmatprep.subr.mxu0 0.0
        %976 = vmatpush2.msra.mxu0 0.0
        %977 = vmatprep.subr.mxu0 0.0
        %978 = vmatpush2.msra.mxu0 0.0
        %979 = vmatprep.subr.mxu0 0.0
        %980 = vmatpush2.msra.mxu0 0.0
        %981 = vmatprep.subr.mxu0 0.0
        %982 = vmatpush2.msra.mxu0 0.0
        %983 = vmatprep.subr.mxu0 0.0
        %984 = vmatpush2.msra.mxu0 0.0
        %985 = vmatprep.subr.mxu0 0.0
        %986 = vmatpush2.msra.mxu0 0.0
        %987 = vmatprep.subr.mxu0 0.0
        %988 = vmatpush2.msra.mxu0 0.0
        %989 = vmatprep.subr.mxu0 0.0
        %990 = vmatpush2.msra.mxu0 0.0
        %991 = vmatprep.subr.mxu0 0.0
        %992 = vmatpush2.msra.mxu0 0.0
        %993 = vmatprep.subr.mxu0 0.0
        %994 = vmatpush2.msra.mxu0 0.0
        %995 = vmatprep.subr.mxu0 0.0
        %996 = vmatpush2.msra.mxu0 0.0
        %997 = vmatprep.subr.mxu0 0.0
        %998 = vmatpush2.msra.mxu0 0.0
        %999 = vmatprep.subr.mxu0 0.0
        %1000 = vmatpush2.msra.mxu0 0.0
        %1001 = vmatprep.subr.mxu0 0.0
        %1002 = vmatpush2.msra.mxu0 0.0
        %1003 = vmatprep.subr.mxu0 0.0
        %1004 = vmatpush2.msra.mxu0 0.0
        %1005 = vmatprep.mubr.f32.mxu0 0.0
        %1006 = vmatmul.mubr.f32.gmra.mxu0 %v729
        %v1007 = vpop.f32.mrf.mxu0
        %v1008 = vadd.f32 0.0, %v1007
        %v1009 = vpop.f32.mrf.mxu0
        %1010 = vdwg.mxu0
        %v1011 = vmul.f32 %v798, 5.656854
        %v1012 = vmul.f32 %v868, 5.656854
        %v1013 = vmul.f32 %v938, 5.656854
        %v1014 = vmul.f32 %v1008, 5.656854
        %v1015 = vsel %vm727, %v1011, 0.0
        %1016 = vadd.xlane.f32.xlu0 %v1015
        %v1017 = vpop.xlane.xlu0 %1016
        %v1018 = vsel %vm727, %v1012, 0.0
        %1019 = vadd.xlane.f32.xlu0 %v1018
        %v1020 = vpop.xlane.xlu0 %1019
        %v1021 = vsel %vm727, %v1013, 0.0
        %1022 = vadd.xlane.f32.xlu0 %v1021
        %v1023 = vpop.xlane.xlu0 %1022
        %v1024 = vsel %vm727, %v1014, 0.0
        %1025 = vadd.xlane.f32.xlu0 %v1024
        %v1026 = vpop.xlane.xlu0 %1025
        %v1027 = vrcp.pop 32.0
        %v1028 = vmul.f32 %v1017, %v1027
        %v1029 = vmul.f32 %v1020, %v1027
        %v1030 = vmul.f32 %v1023, %v1027
        %v1031 = vmul.f32 %v1026, %v1027
        %v1032 = vsub.f32 %v1011, %v1028
        %v1033 = vsub.f32 %v1012, %v1029
        %v1034 = vsub.f32 %v1013, %v1030
        %v1035 = vsub.f32 %v1014, %v1031
        %v1036 = vmul.f32 %v1032, %v1032
        %v1037 = vmul.f32 %v1033, %v1033
        %v1038 = vmul.f32 %v1034, %v1034
        %v1039 = vmul.f32 %v1035, %v1035
        %v1040 = vsel %vm727, %v1036, 0.0
        %1041 = vadd.xlane.f32.xlu0 %v1040
        %v1042 = vpop.xlane.xlu0 %1041
        %v1043 = vsel %vm727, %v1037, 0.0
        %1044 = vadd.xlane.f32.xlu0 %v1043
        %v1045 = vpop.xlane.xlu0 %1044
        %v1046 = vsel %vm727, %v1038, 0.0
        %1047 = vadd.xlane.f32.xlu0 %v1046
        %v1048 = vpop.xlane.xlu0 %1047
        %v1049 = vsel %vm727, %v1039, 0.0
        %1050 = vadd.xlane.f32.xlu0 %v1049
        %v1051 = vpop.xlane.xlu0 %1050
        %v1052 = vmul.f32 %v1042, %v1027
        %v1053 = vmul.f32 %v1045, %v1027
        %v1054 = vmul.f32 %v1048, %v1027
        %v1055 = vmul.f32 %v1051, %v1027
        %v1056 = vadd.f32 %v1052, 1e-05
        %v1057 = vadd.f32 %v1053, 1e-05
        %v1058 = vadd.f32 %v1054, 1e-05
        %v1059 = vadd.f32 %v1055, 1e-05
        %v1060 = vrsqrt.pop %v1056
        %v1061 = vrsqrt.pop %v1057
        %v1062 = vrsqrt.pop %v1058
        %v1063 = vrsqrt.pop %v1059
        %v1064 = vmul.f32 %v1032, %v1060
        %v1065 = vmul.f32 %v1033, %v1061
        %v1066 = vmul.f32 %v1034, %v1062
        %v1067 = vmul.f32 %v1035, %v1063
        %v1068 = vlaneseq
        %v1069 = vshrl.u32 %v1068, 7
        %v1070 = vsub.s32 0, %v1069
        %v1071 = vrot.slane %v264, %v1070
        %v1072 = vmul.f32 %v1064, %v1071
        %v1073 = vmul.f32 %v1065, %v1071
        %v1074 = vmul.f32 %v1066, %v1071
        %v1075 = vmul.f32 %v1067, %v1071
        %v1076 = vlaneseq
        %v1077 = vshrl.u32 %v1076, 7
        %v1078 = vsub.s32 1, %v1077
        %v1079 = vrot.slane %v264, %v1078
        %v1080 = vadd.f32 %v1072, %v1079
        %v1081 = vadd.f32 %v1073, %v1079
        %v1082 = vadd.f32 %v1074, %v1079
        %v1083 = vadd.f32 %v1075, %v1079
        %v1084 = vld [vmem:[%s228] sm:$0xff]
        %v1085 = vld [vmem:[%s228 + $0x8] sm:$0xff]
        %v1086 = vld [vmem:[%s228 + $0x10] sm:$0xff]
        %v1087 = vld [vmem:[%s228 + $0x18] sm:$0xff]
        %1088 = vset.pattern.permute.xlu0 2
        %1089 = vperm.xlu0 %1088, %v1084
        %v1090 = vpop.permute.xlu0 %1089
        %1091 = vset.pattern.permute.xlu0 2
        %1092 = vperm.xlu0 %1091, %v1085
        %v1093 = vpop.permute.xlu0 %1092
        %1094 = vset.pattern.permute.xlu0 2
        %1095 = vperm.xlu0 %1094, %v1086
        %v1096 = vpop.permute.xlu0 %1095
        %1097 = vset.pattern.permute.xlu0 2
        %1098 = vperm.xlu0 %1097, %v1087
        %v1099 = vpop.permute.xlu0 %1098
        %vm1100 = vcmp.eq.s32.totalorder %v282, %v1090
        %vm1101 = vcmp.eq.s32.totalorder %v282, %v1093
        %vm1102 = vcmp.eq.s32.totalorder %v282, %v1096
        %vm1103 = vcmp.eq.s32.totalorder %v282, %v1099
        %v1104 = vsel %vm1100, 1, 0
        %v1105 = vsel %vm1101, 1, 0
        %v1106 = vsel %vm1102, 1, 0
        %v1107 = vsel %vm1103, 1, 0
        %v1108 = vcvt.s32.f32 %v1104
        %v1109 = vcvt.s32.f32 %v1105
        %v1110 = vcvt.s32.f32 %v1106
        %v1111 = vcvt.s32.f32 %v1107
        %1112 = vset.pattern.permute.xlu0 3
        %1113 = vperm.xlu0 %1112, %v1084
        %v1114 = vpop.permute.xlu0 %1113
        %1116 = vset.pattern.permute.xlu0 3
        %1117 = vperm.xlu0 %1116, %v1085
        %v1118 = vpop.permute.xlu0 %1117
        %1120 = vset.pattern.permute.xlu0 3
        %1121 = vperm.xlu0 %1120, %v1086
        %v1122 = vpop.permute.xlu0 %1121
        %1124 = vset.pattern.permute.xlu0 3
        %1125 = vperm.xlu0 %1124, %v1087
        %v1126 = vpop.permute.xlu0 %1125
        %v1128 = vmul.f32 %v1108, %v1114
        %v1129 = vmul.f32 %v1109, %v1118
        %v1130 = vmul.f32 %v1110, %v1122
        %v1131 = vmul.f32 %v1111, %v1126
        %v1132 = vadd.s32 %v1084, 3
        %v1133 = vadd.s32 %v1085, 3
        %v1134 = vadd.s32 %v1086, 3
        %v1135 = vadd.s32 %v1087, 3
        %1136 = vset.pattern.permute.xlu0 4
        %1137 = vperm.xlu0 %1136, %v1132
        %v1138 = vpop.permute.xlu0 %1137
        %1139 = vset.pattern.permute.xlu0 4
        %1140 = vperm.xlu0 %1139, %v1133
        %v1141 = vpop.permute.xlu0 %1140
        %1142 = vset.pattern.permute.xlu0 4
        %1143 = vperm.xlu0 %1142, %v1134
        %v1144 = vpop.permute.xlu0 %1143
        %1145 = vset.pattern.permute.xlu0 4
        %1146 = vperm.xlu0 %1145, %v1135
        %v1147 = vpop.permute.xlu0 %1146
        %vm1148 = vcmp.eq.s32.totalorder %v282, %v1138
        %vm1149 = vcmp.eq.s32.totalorder %v282, %v1141
        %vm1150 = vcmp.eq.s32.totalorder %v282, %v1144
        %vm1151 = vcmp.eq.s32.totalorder %v282, %v1147
        %v1152 = vadd.s32 %v1084, 19
        %v1153 = vadd.s32 %v1085, 19
        %v1154 = vadd.s32 %v1086, 19
        %v1155 = vadd.s32 %v1087, 19
        %1156 = vset.pattern.permute.xlu0 5
        %1157 = vperm.xlu0 %1156, %v1152
        %v1158 = vpop.permute.xlu0 %1157
        %1159 = vset.pattern.permute.xlu0 5
        %1160 = vperm.xlu0 %1159, %v1153
        %v1161 = vpop.permute.xlu0 %1160
        %1162 = vset.pattern.permute.xlu0 5
        %1163 = vperm.xlu0 %1162, %v1154
        %v1164 = vpop.permute.xlu0 %1163
        %1165 = vset.pattern.permute.xlu0 5
        %1166 = vperm.xlu0 %1165, %v1155
        %v1167 = vpop.permute.xlu0 %1166
        %vm1168 = vcmp.eq.s32.totalorder %v282, %v1158
        %vm1169 = vcmp.eq.s32.totalorder %v282, %v1161
        %vm1170 = vcmp.eq.s32.totalorder %v282, %v1164
        %vm1171 = vcmp.eq.s32.totalorder %v282, %v1167
        %vm1172 = vmor %vm1148, %vm1168
        %vm1173 = vmor %vm1149, %vm1169
        %vm1174 = vmor %vm1150, %vm1170
        %vm1175 = vmor %vm1151, %vm1171
        %v1176 = vsel %vm1172, 1, 0
        %v1177 = vsel %vm1173, 1, 0
        %v1178 = vsel %vm1174, 1, 0
        %v1179 = vsel %vm1175, 1, 0
        %v1180 = vcvt.s32.f32 %v1176
        %v1181 = vcvt.s32.f32 %v1177
        %v1182 = vcvt.s32.f32 %v1178
        %v1183 = vcvt.s32.f32 %v1179
        %v1184 = vadd.f32 %v1128, %v1180
        %v1185 = vadd.f32 %v1129, %v1181
        %v1186 = vadd.f32 %v1130, %v1182
        %v1187 = vadd.f32 %v1131, %v1183
        %1188 = vmatprep.subr.mxu0 0.0
        %1189 = vmatpush1.msra.mxu0 %v262
        %1190 = vmatprep.subr.mxu0 0.0
        %1191 = vmatpush1.msra.mxu0 %v261
        %1192 = vmatprep.subr.mxu0 0.0
        %1193 = vmatpush1.msra.mxu0 %v260
        %1194 = vmatprep.subr.mxu0 0.0
        %1195 = vmatpush1.msra.mxu0 %v259
        %1196 = vmatprep.subr.mxu0 0.0
        %1197 = vmatpush1.msra.mxu0 %v258
        %1198 = vmatprep.subr.mxu0 0.0
        %1199 = vmatpush1.msra.mxu0 %v257
        %1200 = vmatprep.subr.mxu0 0.0
        %1201 = vmatpush1.msra.mxu0 %v256
        %1202 = vmatprep.subr.mxu0 0.0
        %1203 = vmatpush1.msra.mxu0 %v255
        %1204 = vmatprep.subr.mxu0 0.0
        %1205 = vmatpush1.msra.mxu0 %v254
        %1206 = vmatprep.subr.mxu0 0.0
        %1207 = vmatpush1.msra.mxu0 %v253
        %1208 = vmatprep.subr.mxu0 0.0
        %1209 = vmatpush1.msra.mxu0 %v252
        %1210 = vmatprep.subr.mxu0 0.0
        %1211 = vmatpush1.msra.mxu0 %v251
        %1212 = vmatprep.subr.mxu0 0.0
        %1213 = vmatpush1.msra.mxu0 %v250
        %1214 = vmatprep.subr.mxu0 0.0
        %1215 = vmatpush1.msra.mxu0 %v249
        %1216 = vmatprep.subr.mxu0 0.0
        %1217 = vmatpush1.msra.mxu0 %v248
        %1218 = vmatprep.subr.mxu0 0.0
        %1219 = vmatpush1.msra.mxu0 %v247
        %1220 = vmatprep.subr.mxu0 0.0
        %1221 = vmatpush2.msra.mxu0 0.0
        %1222 = vmatprep.subr.mxu0 0.0
        %1223 = vmatpush2.msra.mxu0 0.0
        %1224 = vmatprep.subr.mxu0 0.0
        %1225 = vmatpush2.msra.mxu0 0.0
        %1226 = vmatprep.subr.mxu0 0.0
        %1227 = vmatpush2.msra.mxu0 0.0
        %1228 = vmatprep.subr.mxu0 0.0
        %1229 = vmatpush2.msra.mxu0 0.0
        %1230 = vmatprep.subr.mxu0 0.0
        %1231 = vmatpush2.msra.mxu0 0.0
        %1232 = vmatprep.subr.mxu0 0.0
        %1233 = vmatpush2.msra.mxu0 0.0
        %1234 = vmatprep.subr.mxu0 0.0
        %1235 = vmatpush2.msra.mxu0 0.0
        %1236 = vmatprep.subr.mxu0 0.0
        %1237 = vmatpush2.msra.mxu0 0.0
        %1238 = vmatprep.subr.mxu0 0.0
        %1239 = vmatpush2.msra.mxu0 0.0
        %1240 = vmatprep.subr.mxu0 0.0
        %1241 = vmatpush2.msra.mxu0 0.0
        %1242 = vmatprep.subr.mxu0 0.0
        %1243 = vmatpush2.msra.mxu0 0.0
        %1244 = vmatprep.subr.mxu0 0.0
        %1245 = vmatpush2.msra.mxu0 0.0
        %1246 = vmatprep.subr.mxu0 0.0
        %1247 = vmatpush2.msra.mxu0 0.0
        %1248 = vmatprep.subr.mxu0 0.0
        %1249 = vmatpush2.msra.mxu0 0.0
        %1250 = vmatprep.subr.mxu0 0.0
        %1251 = vmatpush2.msra.mxu0 0.0
        %1252 = vmatprep.mubr.f32.mxu0 0.0
        %1253 = vmatmul.mubr.f32.gmra.mxu0 %v1184
        %v1254 = vpop.f32.mrf.mxu0
        %v1255 = vadd.f32 0.0, %v1254
        %v1256 = vpop.f32.mrf.mxu0
        %1257 = vmatprep.mubr.f32.mxu0 0.0
        %1258 = vmatmul.mubr.f32.gmra.mxu0 %v1185
        %v1259 = vpop.f32.mrf.mxu0
        %v1260 = vadd.f32 0.0, %v1259
        %v1261 = vpop.f32.mrf.mxu0
        %1262 = vmatprep.mubr.f32.mxu0 0.0
        %1263 = vmatmul.mubr.f32.gmra.mxu0 %v1186
        %v1264 = vpop.f32.mrf.mxu0
        %v1265 = vadd.f32 0.0, %v1264
        %v1266 = vpop.f32.mrf.mxu0
        %1267 = vmatprep.mubr.f32.mxu0 0.0
        %1268 = vmatmul.mubr.f32.gmra.mxu0 %v1187
        %v1269 = vpop.f32.mrf.mxu0
        %v1270 = vadd.f32 0.0, %v1269
        %v1271 = vpop.f32.mrf.mxu0
        %1272 = vdwg.mxu0
        %1273 = vset.pattern.permute.xlu0 0
        %1274 = vperm.xlu0 %1273, %v1084
        %v1275 = vpop.permute.xlu0 %1274
        %1276 = vset.pattern.permute.xlu0 0
        %1277 = vperm.xlu0 %1276, %v1085
        %v1278 = vpop.permute.xlu0 %1277
        %1279 = vset.pattern.permute.xlu0 0
        %1280 = vperm.xlu0 %1279, %v1086
        %v1281 = vpop.permute.xlu0 %1280
        %1282 = vset.pattern.permute.xlu0 0
        %1283 = vperm.xlu0 %1282, %v1087
        %v1284 = vpop.permute.xlu0 %1283
        %vm1285 = vcmp.eq.s32.totalorder %v282, %v1275
        %vm1286 = vcmp.eq.s32.totalorder %v282, %v1278
        %vm1287 = vcmp.eq.s32.totalorder %v282, %v1281
        %vm1288 = vcmp.eq.s32.totalorder %v282, %v1284
        %v1289 = vsel %vm1285, 1, 0
        %v1290 = vsel %vm1286, 1, 0
        %v1291 = vsel %vm1287, 1, 0
        %v1292 = vsel %vm1288, 1, 0
        %v1293 = vcvt.s32.f32 %v1289
        %v1294 = vcvt.s32.f32 %v1290
        %v1295 = vcvt.s32.f32 %v1291
        %v1296 = vcvt.s32.f32 %v1292
        %1297 = vset.pattern.permute.xlu0 1
        %1298 = vperm.xlu0 %1297, %v1084
        %v1299 = vpop.permute.xlu0 %1298
        %1301 = vset.pattern.permute.xlu0 1
        %1302 = vperm.xlu0 %1301, %v1085
        %v1303 = vpop.permute.xlu0 %1302
        %1305 = vset.pattern.permute.xlu0 1
        %1306 = vperm.xlu0 %1305, %v1086
        %v1307 = vpop.permute.xlu0 %1306
        %1309 = vset.pattern.permute.xlu0 1
        %1310 = vperm.xlu0 %1309, %v1087
        %v1311 = vpop.permute.xlu0 %1310
        %v1313 = vmul.f32 %v1293, %v1299
        %v1314 = vmul.f32 %v1294, %v1303
        %v1315 = vmul.f32 %v1295, %v1307
        %v1316 = vmul.f32 %v1296, %v1311
        %v1317 = vmul.f32 %v1255, 5.656854
        %v1318 = vmul.f32 %v1260, 5.656854
        %v1319 = vmul.f32 %v1265, 5.656854
        %v1320 = vmul.f32 %v1270, 5.656854
        %vm1321 = vcmask 64512
        %v1323 = vsel %vm1321, %v1313, 0
        %1325 = vmatprep.subr.mxu0 0.0
        %1326 = vmatpush1.msra.mxu0 0.0
        %1327 = vmatprep.subr.mxu0 0.0
        %1328 = vmatpush1.msra.mxu0 0.0
        %1329 = vmatprep.subr.mxu0 0.0
        %1330 = vmatpush1.msra.mxu0 0.0
        %1331 = vmatprep.subr.mxu0 0.0
        %1332 = vmatpush1.msra.mxu0 0.0
        %1333 = vmatprep.subr.mxu0 0.0
        %1334 = vmatpush1.msra.mxu0 0.0
        %1335 = vmatprep.subr.mxu0 0.0
        %1336 = vmatpush1.msra.mxu0 0.0
        %1337 = vmatprep.subr.mxu0 0.0
        %1338 = vmatpush1.msra.mxu0 0.0
        %1339 = vmatprep.subr.mxu0 0.0
        %1340 = vmatpush1.msra.mxu0 0.0
        %1341 = vmatprep.subr.mxu0 0.0
        %1342 = vmatpush1.msra.mxu0 0.0
        %1343 = vmatprep.subr.mxu0 0.0
        %1344 = vmatpush1.msra.mxu0 0.0
        %1345 = vmatprep.subr.mxu0 0.0
        %1346 = vmatpush1.msra.mxu0 0.0
        %1347 = vmatprep.subr.mxu0 0.0
        %1348 = vmatpush1.msra.mxu0 0.0
        %1349 = vmatprep.subr.mxu0 0.0
        %1350 = vmatpush1.msra.mxu0 0.0
        %1351 = vmatprep.subr.mxu0 0.0
        %1352 = vmatpush1.msra.mxu0 0.0
        %1353 = vmatprep.subr.mxu0 0.0
        %1354 = vmatpush1.msra.mxu0 0.0
        %1355 = vmatprep.subr.mxu0 0.0
        %1356 = vmatpush1.msra.mxu0 %v1080
        %1357 = vmatprep.subr.mxu0 0.0
        %1358 = vmatpush2.msra.mxu0 0.0
        %1359 = vmatprep.subr.mxu0 0.0
        %1360 = vmatpush2.msra.mxu0 0.0
        %1361 = vmatprep.subr.mxu0 0.0
        %1362 = vmatpush2.msra.mxu0 0.0
        %1363 = vmatprep.subr.mxu0 0.0
        %1364 = vmatpush2.msra.mxu0 0.0
        %1365 = vmatprep.subr.mxu0 0.0
        %1366 = vmatpush2.msra.mxu0 0.0
        %1367 = vmatprep.subr.mxu0 0.0
        %1368 = vmatpush2.msra.mxu0 0.0
        %1369 = vmatprep.subr.mxu0 0.0
        %1370 = vmatpush2.msra.mxu0 0.0
        %1371 = vmatprep.subr.mxu0 0.0
        %1372 = vmatpush2.msra.mxu0 0.0
        %1373 = vmatprep.subr.mxu0 0.0
        %1374 = vmatpush2.msra.mxu0 0.0
        %1375 = vmatprep.subr.mxu0 0.0
        %1376 = vmatpush2.msra.mxu0 0.0
        %1377 = vmatprep.subr.mxu0 0.0
        %1378 = vmatpush2.msra.mxu0 0.0
        %1379 = vmatprep.subr.mxu0 0.0
        %1380 = vmatpush2.msra.mxu0 0.0
        %1381 = vmatprep.subr.mxu0 0.0
        %1382 = vmatpush2.msra.mxu0 0.0
        %1383 = vmatprep.subr.mxu0 0.0
        %1384 = vmatpush2.msra.mxu0 0.0
        %1385 = vmatprep.subr.mxu0 0.0
        %1386 = vmatpush2.msra.mxu0 0.0
        %1387 = vmatprep.subr.mxu0 0.0
        %1388 = vmatpush2.msra.mxu0 0.0
        %1389 = vmatprep.mubr.f32.mxu0 0.0
        %1390 = vmatmul.mubr.f32.gmra.mxu0 %v1323
        %v1391 = vpop.f32.mrf.mxu0
        %v1392 = vadd.f32 %v1317, %v1391
        %v1393 = vpop.f32.mrf.mxu0
        %1394 = vdwg.mxu0
        %v1396 = vsel %vm1321, %v1314, 0
        %1398 = vmatprep.subr.mxu0 0.0
        %1399 = vmatpush1.msra.mxu0 0.0
        %1400 = vmatprep.subr.mxu0 0.0
        %1401 = vmatpush1.msra.mxu0 0.0
        %1402 = vmatprep.subr.mxu0 0.0
        %1403 = vmatpush1.msra.mxu0 0.0
        %1404 = vmatprep.subr.mxu0 0.0
        %1405 = vmatpush1.msra.mxu0 0.0
        %1406 = vmatprep.subr.mxu0 0.0
        %1407 = vmatpush1.msra.mxu0 0.0
        %1408 = vmatprep.subr.mxu0 0.0
        %1409 = vmatpush1.msra.mxu0 0.0
        %1410 = vmatprep.subr.mxu0 0.0
        %1411 = vmatpush1.msra.mxu0 0.0
        %1412 = vmatprep.subr.mxu0 0.0
        %1413 = vmatpush1.msra.mxu0 0.0
        %1414 = vmatprep.subr.mxu0 0.0
        %1415 = vmatpush1.msra.mxu0 0.0
        %1416 = vmatprep.subr.mxu0 0.0
        %1417 = vmatpush1.msra.mxu0 0.0
        %1418 = vmatprep.subr.mxu0 0.0
        %1419 = vmatpush1.msra.mxu0 0.0
        %1420 = vmatprep.subr.mxu0 0.0
        %1421 = vmatpush1.msra.mxu0 0.0
        %1422 = vmatprep.subr.mxu0 0.0
        %1423 = vmatpush1.msra.mxu0 0.0
        %1424 = vmatprep.subr.mxu0 0.0
        %1425 = vmatpush1.msra.mxu0 0.0
        %1426 = vmatprep.subr.mxu0 0.0
        %1427 = vmatpush1.msra.mxu0 0.0
        %1428 = vmatprep.subr.mxu0 0.0
        %1429 = vmatpush1.msra.mxu0 %v1081
        %1430 = vmatprep.subr.mxu0 0.0
        %1431 = vmatpush2.msra.mxu0 0.0
        %1432 = vmatprep.subr.mxu0 0.0
        %1433 = vmatpush2.msra.mxu0 0.0
        %1434 = vmatprep.subr.mxu0 0.0
        %1435 = vmatpush2.msra.mxu0 0.0
        %1436 = vmatprep.subr.mxu0 0.0
        %1437 = vmatpush2.msra.mxu0 0.0
        %1438 = vmatprep.subr.mxu0 0.0
        %1439 = vmatpush2.msra.mxu0 0.0
        %1440 = vmatprep.subr.mxu0 0.0
        %1441 = vmatpush2.msra.mxu0 0.0
        %1442 = vmatprep.subr.mxu0 0.0
        %1443 = vmatpush2.msra.mxu0 0.0
        %1444 = vmatprep.subr.mxu0 0.0
        %1445 = vmatpush2.msra.mxu0 0.0
        %1446 = vmatprep.subr.mxu0 0.0
        %1447 = vmatpush2.msra.mxu0 0.0
        %1448 = vmatprep.subr.mxu0 0.0
        %1449 = vmatpush2.msra.mxu0 0.0
        %1450 = vmatprep.subr.mxu0 0.0
        %1451 = vmatpush2.msra.mxu0 0.0
        %1452 = vmatprep.subr.mxu0 0.0
        %1453 = vmatpush2.msra.mxu0 0.0
        %1454 = vmatprep.subr.mxu0 0.0
        %1455 = vmatpush2.msra.mxu0 0.0
        %1456 = vmatprep.subr.mxu0 0.0
        %1457 = vmatpush2.msra.mxu0 0.0
        %1458 = vmatprep.subr.mxu0 0.0
        %1459 = vmatpush2.msra.mxu0 0.0
        %1460 = vmatprep.subr.mxu0 0.0
        %1461 = vmatpush2.msra.mxu0 0.0
        %1462 = vmatprep.mubr.f32.mxu0 0.0
        %1463 = vmatmul.mubr.f32.gmra.mxu0 %v1396
        %v1464 = vpop.f32.mrf.mxu0
        %v1465 = vadd.f32 %v1318, %v1464
        %v1466 = vpop.f32.mrf.mxu0
        %1467 = vdwg.mxu0
        %v1469 = vsel %vm1321, %v1315, 0
        %1471 = vmatprep.subr.mxu0 0.0
        %1472 = vmatpush1.msra.mxu0 0.0
        %1473 = vmatprep.subr.mxu0 0.0
        %1474 = vmatpush1.msra.mxu0 0.0
        %1475 = vmatprep.subr.mxu0 0.0
        %1476 = vmatpush1.msra.mxu0 0.0
        %1477 = vmatprep.subr.mxu0 0.0
        %1478 = vmatpush1.msra.mxu0 0.0
        %1479 = vmatprep.subr.mxu0 0.0
        %1480 = vmatpush1.msra.mxu0 0.0
        %1481 = vmatprep.subr.mxu0 0.0
        %1482 = vmatpush1.msra.mxu0 0.0
        %1483 = vmatprep.subr.mxu0 0.0
        %1484 = vmatpush1.msra.mxu0 0.0
        %1485 = vmatprep.subr.mxu0 0.0
        %1486 = vmatpush1.msra.mxu0 0.0
        %1487 = vmatprep.subr.mxu0 0.0
        %1488 = vmatpush1.msra.mxu0 0.0
        %1489 = vmatprep.subr.mxu0 0.0
        %1490 = vmatpush1.msra.mxu0 0.0
        %1491 = vmatprep.subr.mxu0 0.0
        %1492 = vmatpush1.msra.mxu0 0.0
        %1493 = vmatprep.subr.mxu0 0.0
        %1494 = vmatpush1.msra.mxu0 0.0
        %1495 = vmatprep.subr.mxu0 0.0
        %1496 = vmatpush1.msra.mxu0 0.0
        %1497 = vmatprep.subr.mxu0 0.0
        %1498 = vmatpush1.msra.mxu0 0.0
        %1499 = vmatprep.subr.mxu0 0.0
        %1500 = vmatpush1.msra.mxu0 0.0
        %1501 = vmatprep.subr.mxu0 0.0
        %1502 = vmatpush1.msra.mxu0 %v1082
        %1503 = vmatprep.subr.mxu0 0.0
        %1504 = vmatpush2.msra.mxu0 0.0
        %1505 = vmatprep.subr.mxu0 0.0
        %1506 = vmatpush2.msra.mxu0 0.0
        %1507 = vmatprep.subr.mxu0 0.0
        %1508 = vmatpush2.msra.mxu0 0.0
        %1509 = vmatprep.subr.mxu0 0.0
        %1510 = vmatpush2.msra.mxu0 0.0
        %1511 = vmatprep.subr.mxu0 0.0
        %1512 = vmatpush2.msra.mxu0 0.0
        %1513 = vmatprep.subr.mxu0 0.0
        %1514 = vmatpush2.msra.mxu0 0.0
        %1515 = vmatprep.subr.mxu0 0.0
        %1516 = vmatpush2.msra.mxu0 0.0
        %1517 = vmatprep.subr.mxu0 0.0
        %1518 = vmatpush2.msra.mxu0 0.0
        %1519 = vmatprep.subr.mxu0 0.0
        %1520 = vmatpush2.msra.mxu0 0.0
        %1521 = vmatprep.subr.mxu0 0.0
        %1522 = vmatpush2.msra.mxu0 0.0
        %1523 = vmatprep.subr.mxu0 0.0
        %1524 = vmatpush2.msra.mxu0 0.0
        %1525 = vmatprep.subr.mxu0 0.0
        %1526 = vmatpush2.msra.mxu0 0.0
        %1527 = vmatprep.subr.mxu0 0.0
        %1528 = vmatpush2.msra.mxu0 0.0
        %1529 = vmatprep.subr.mxu0 0.0
        %1530 = vmatpush2.msra.mxu0 0.0
        %1531 = vmatprep.subr.mxu0 0.0
        %1532 = vmatpush2.msra.mxu0 0.0
        %1533 = vmatprep.subr.mxu0 0.0
        %1534 = vmatpush2.msra.mxu0 0.0
        %1535 = vmatprep.mubr.f32.mxu0 0.0
        %1536 = vmatmul.mubr.f32.gmra.mxu0 %v1469
        %v1537 = vpop.f32.mrf.mxu0
        %v1538 = vadd.f32 %v1319, %v1537
        %v1539 = vpop.f32.mrf.mxu0
        %1540 = vdwg.mxu0
        %v1542 = vsel %vm1321, %v1316, 0
        %1544 = vmatprep.subr.mxu0 0.0
        %1545 = vmatpush1.msra.mxu0 0.0
        %1546 = vmatprep.subr.mxu0 0.0
        %1547 = vmatpush1.msra.mxu0 0.0
        %1548 = vmatprep.subr.mxu0 0.0
        %1549 = vmatpush1.msra.mxu0 0.0
        %1550 = vmatprep.subr.mxu0 0.0
        %1551 = vmatpush1.msra.mxu0 0.0
        %1552 = vmatprep.subr.mxu0 0.0
        %1553 = vmatpush1.msra.mxu0 0.0
        %1554 = vmatprep.subr.mxu0 0.0
        %1555 = vmatpush1.msra.mxu0 0.0
        %1556 = vmatprep.subr.mxu0 0.0
        %1557 = vmatpush1.msra.mxu0 0.0
        %1558 = vmatprep.subr.mxu0 0.0
        %1559 = vmatpush1.msra.mxu0 0.0
        %1560 = vmatprep.subr.mxu0 0.0
        %1561 = vmatpush1.msra.mxu0 0.0
        %1562 = vmatprep.subr.mxu0 0.0
        %1563 = vmatpush1.msra.mxu0 0.0
        %1564 = vmatprep.subr.mxu0 0.0
        %1565 = vmatpush1.msra.mxu0 0.0
        %1566 = vmatprep.subr.mxu0 0.0
        %1567 = vmatpush1.msra.mxu0 0.0
        %1568 = vmatprep.subr.mxu0 0.0
        %1569 = vmatpush1.msra.mxu0 0.0
        %1570 = vmatprep.subr.mxu0 0.0
        %1571 = vmatpush1.msra.mxu0 0.0
        %1572 = vmatprep.subr.mxu0 0.0
        %1573 = vmatpush1.msra.mxu0 0.0
        %1574 = vmatprep.subr.mxu0 0.0
        %1575 = vmatpush1.msra.mxu0 %v1083
        %1576 = vmatprep.subr.mxu0 0.0
        %1577 = vmatpush2.msra.mxu0 0.0
        %1578 = vmatprep.subr.mxu0 0.0
        %1579 = vmatpush2.msra.mxu0 0.0
        %1580 = vmatprep.subr.mxu0 0.0
        %1581 = vmatpush2.msra.mxu0 0.0
        %1582 = vmatprep.subr.mxu0 0.0
        %1583 = vmatpush2.msra.mxu0 0.0
        %1584 = vmatprep.subr.mxu0 0.0
        %1585 = vmatpush2.msra.mxu0 0.0
        %1586 = vmatprep.subr.mxu0 0.0
        %1587 = vmatpush2.msra.mxu0 0.0
        %1588 = vmatprep.subr.mxu0 0.0
        %1589 = vmatpush2.msra.mxu0 0.0
        %1590 = vmatprep.subr.mxu0 0.0
        %1591 = vmatpush2.msra.mxu0 0.0
        %1592 = vmatprep.subr.mxu0 0.0
        %1593 = vmatpush2.msra.mxu0 0.0
        %1594 = vmatprep.subr.mxu0 0.0
        %1595 = vmatpush2.msra.mxu0 0.0
        %1596 = vmatprep.subr.mxu0 0.0
        %1597 = vmatpush2.msra.mxu0 0.0
        %1598 = vmatprep.subr.mxu0 0.0
        %1599 = vmatpush2.msra.mxu0 0.0
        %1600 = vmatprep.subr.mxu0 0.0
        %1601 = vmatpush2.msra.mxu0 0.0
        %1602 = vmatprep.subr.mxu0 0.0
        %1603 = vmatpush2.msra.mxu0 0.0
        %1604 = vmatprep.subr.mxu0 0.0
        %1605 = vmatpush2.msra.mxu0 0.0
        %1606 = vmatprep.subr.mxu0 0.0
        %1607 = vmatpush2.msra.mxu0 0.0
        %1608 = vmatprep.mubr.f32.mxu0 0.0
        %1609 = vmatmul.mubr.f32.gmra.mxu0 %v1542
        %v1610 = vpop.f32.mrf.mxu0
        %v1611 = vadd.f32 %v1320, %v1610
        %v1612 = vpop.f32.mrf.mxu0
        %1613 = vdwg.mxu0
        %v1614 = vsel %vm727, %v1392, 0.0
        %1615 = vadd.xlane.f32.xlu0 %v1614
        %v1616 = vpop.xlane.xlu0 %1615
        %v1617 = vsel %vm727, %v1465, 0.0
        %1618 = vadd.xlane.f32.xlu0 %v1617
        %v1619 = vpop.xlane.xlu0 %1618
        %v1620 = vsel %vm727, %v1538, 0.0
        %1621 = vadd.xlane.f32.xlu0 %v1620
        %v1622 = vpop.xlane.xlu0 %1621
        %v1623 = vsel %vm727, %v1611, 0.0
        %1624 = vadd.xlane.f32.xlu0 %v1623
        %v1625 = vpop.xlane.xlu0 %1624
        %v1626 = vmul.f32 %v1616, %v1027
        %v1627 = vmul.f32 %v1619, %v1027
        %v1628 = vmul.f32 %v1622, %v1027
        %v1629 = vmul.f32 %v1625, %v1027
        %v1630 = vsub.f32 %v1392, %v1626
        %v1631 = vsub.f32 %v1465, %v1627
        %v1632 = vsub.f32 %v1538, %v1628
        %v1633 = vsub.f32 %v1611, %v1629
        %v1634 = vmul.f32 %v1630, %v1630
        %v1635 = vmul.f32 %v1631, %v1631
        %v1636 = vmul.f32 %v1632, %v1632
        %v1637 = vmul.f32 %v1633, %v1633
        %v1638 = vsel %vm727, %v1634, 0.0
        %1639 = vadd.xlane.f32.xlu0 %v1638
        %v1640 = vpop.xlane.xlu0 %1639
        %v1641 = vsel %vm727, %v1635, 0.0
        %1642 = vadd.xlane.f32.xlu0 %v1641
        %v1643 = vpop.xlane.xlu0 %1642
        %v1644 = vsel %vm727, %v1636, 0.0
        %1645 = vadd.xlane.f32.xlu0 %v1644
        %v1646 = vpop.xlane.xlu0 %1645
        %v1647 = vsel %vm727, %v1637, 0.0
        %1648 = vadd.xlane.f32.xlu0 %v1647
        %v1649 = vpop.xlane.xlu0 %1648
        %v1650 = vmul.f32 %v1640, %v1027
        %v1651 = vmul.f32 %v1643, %v1027
        %v1652 = vmul.f32 %v1646, %v1027
        %v1653 = vmul.f32 %v1649, %v1027
        %v1654 = vadd.f32 %v1650, 1e-05
        %v1655 = vadd.f32 %v1651, 1e-05
        %v1656 = vadd.f32 %v1652, 1e-05
        %v1657 = vadd.f32 %v1653, 1e-05
        %v1658 = vrsqrt.pop %v1654
        %v1659 = vrsqrt.pop %v1655
        %v1660 = vrsqrt.pop %v1656
        %v1661 = vrsqrt.pop %v1657
        %v1662 = vmul.f32 %v1630, %v1658
        %v1663 = vmul.f32 %v1631, %v1659
        %v1664 = vmul.f32 %v1632, %v1660
        %v1665 = vmul.f32 %v1633, %v1661
        %v1666 = vlaneseq
        %v1667 = vshrl.u32 %v1666, 7
        %v1668 = vsub.s32 2, %v1667
        %v1669 = vrot.slane %v264, %v1668
        %v1670 = vmul.f32 %v1662, %v1669
        %v1671 = vmul.f32 %v1663, %v1669
        %v1672 = vmul.f32 %v1664, %v1669
        %v1673 = vmul.f32 %v1665, %v1669
        %v1674 = vlaneseq
        %v1675 = vshrl.u32 %v1674, 7
        %v1676 = vsub.s32 3, %v1675
        %v1677 = vrot.slane %v264, %v1676
        %v1678 = vadd.f32 %v1670, %v1677
        %v1679 = vadd.f32 %v1671, %v1677
        %v1680 = vadd.f32 %v1672, %v1677
        %v1681 = vadd.f32 %v1673, %v1677
        %v1683 = vsel %vm727, %v1678, 0
        %v1686 = vsel %vm727, %v263, 0
        %v1689 = vsel %vm727, %v1080, 0
        %v1692 = vsel %vm727, 0.0, 0
        %1694 = vmatprep.subr.mxu0 0.0
        %1695 = vmatpush1.xpose.msra.mxu0 %v1692
        %1696 = vmatprep.subr.mxu0 0.0
        %1697 = vmatpush1.xpose.msra.mxu0 %v1692
        %1698 = vmatprep.subr.mxu0 0.0
        %1699 = vmatpush1.xpose.msra.mxu0 %v1692
        %1700 = vmatprep.subr.mxu0 0.0
        %1701 = vmatpush1.xpose.msra.mxu0 %v1692
        %1702 = vmatprep.subr.mxu0 0.0
        %1703 = vmatpush1.xpose.msra.mxu0 %v1692
        %1704 = vmatprep.subr.mxu0 0.0
        %1705 = vmatpush1.xpose.msra.mxu0 %v1692
        %1706 = vmatprep.subr.mxu0 0.0
        %1707 = vmatpush1.xpose.msra.mxu0 %v1692
        %1708 = vmatprep.subr.mxu0 0.0
        %1709 = vmatpush1.xpose.msra.mxu0 %v1692
        %1710 = vmatprep.subr.mxu0 0.0
        %1711 = vmatpush1.xpose.msra.mxu0 %v1692
        %1712 = vmatprep.subr.mxu0 0.0
        %1713 = vmatpush1.xpose.msra.mxu0 %v1692
        %1714 = vmatprep.subr.mxu0 0.0
        %1715 = vmatpush1.xpose.msra.mxu0 %v1692
        %1716 = vmatprep.subr.mxu0 0.0
        %1717 = vmatpush1.xpose.msra.mxu0 %v1692
        %1718 = vmatprep.subr.mxu0 0.0
        %1719 = vmatpush1.xpose.msra.mxu0 %v1692
        %1720 = vmatprep.subr.mxu0 0.0
        %1721 = vmatpush1.xpose.msra.mxu0 %v1692
        %1722 = vmatprep.subr.mxu0 0.0
        %1723 = vmatpush1.xpose.msra.mxu0 %v1689
        %1724 = vmatprep.subr.mxu0 0.0
        %1725 = vmatpush1.xpose.msra.mxu0 %v1686
        %1726 = vmatprep.subr.mxu0 0.0
        %1727 = vmatpush2.xpose.msra.mxu0 0.0
        %1728 = vmatprep.subr.mxu0 0.0
        %1729 = vmatpush2.xpose.msra.mxu0 0.0
        %1730 = vmatprep.subr.mxu0 0.0
        %1731 = vmatpush2.xpose.msra.mxu0 0.0
        %1732 = vmatprep.subr.mxu0 0.0
        %1733 = vmatpush2.xpose.msra.mxu0 0.0
        %1734 = vmatprep.subr.mxu0 0.0
        %1735 = vmatpush2.xpose.msra.mxu0 0.0
        %1736 = vmatprep.subr.mxu0 0.0
        %1737 = vmatpush2.xpose.msra.mxu0 0.0
        %1738 = vmatprep.subr.mxu0 0.0
        %1739 = vmatpush2.xpose.msra.mxu0 0.0
        %1740 = vmatprep.subr.mxu0 0.0
        %1741 = vmatpush2.xpose.msra.mxu0 0.0
        %1742 = vmatprep.subr.mxu0 0.0
        %1743 = vmatpush2.xpose.msra.mxu0 0.0
        %1744 = vmatprep.subr.mxu0 0.0
        %1745 = vmatpush2.xpose.msra.mxu0 0.0
        %1746 = vmatprep.subr.mxu0 0.0
        %1747 = vmatpush2.xpose.msra.mxu0 0.0
        %1748 = vmatprep.subr.mxu0 0.0
        %1749 = vmatpush2.xpose.msra.mxu0 0.0
        %1750 = vmatprep.subr.mxu0 0.0
        %1751 = vmatpush2.xpose.msra.mxu0 0.0
        %1752 = vmatprep.subr.mxu0 0.0
        %1753 = vmatpush2.xpose.msra.mxu0 0.0
        %1754 = vmatprep.subr.mxu0 0.0
        %1755 = vmatpush2.xpose.msra.mxu0 0.0
        %1756 = vmatprep.subr.mxu0 0.0
        %1757 = vmatpush2.xpose.msra.mxu0 0.0
        %1758 = vmatprep.mubr.f32.mxu0 0.0
        %1759 = vmatmul.mubr.f32.gmra.mxu0 %v1683
        %v1760 = vpop.f32.mrf.mxu0
        %v1761 = vadd.f32 0.0, %v1760
        %v1762 = vpop.f32.mrf.mxu0
        %1763 = vdwg.mxu0
        %v1765 = vsel %vm727, %v1679, 0
        %v1768 = vsel %vm727, %v1081, 0
        %1770 = vmatprep.subr.mxu0 0.0
        %1771 = vmatpush1.xpose.msra.mxu0 %v1692
        %1772 = vmatprep.subr.mxu0 0.0
        %1773 = vmatpush1.xpose.msra.mxu0 %v1692
        %1774 = vmatprep.subr.mxu0 0.0
        %1775 = vmatpush1.xpose.msra.mxu0 %v1692
        %1776 = vmatprep.subr.mxu0 0.0
        %1777 = vmatpush1.xpose.msra.mxu0 %v1692
        %1778 = vmatprep.subr.mxu0 0.0
        %1779 = vmatpush1.xpose.msra.mxu0 %v1692
        %1780 = vmatprep.subr.mxu0 0.0
        %1781 = vmatpush1.xpose.msra.mxu0 %v1692
        %1782 = vmatprep.subr.mxu0 0.0
        %1783 = vmatpush1.xpose.msra.mxu0 %v1692
        %1784 = vmatprep.subr.mxu0 0.0
        %1785 = vmatpush1.xpose.msra.mxu0 %v1692
        %1786 = vmatprep.subr.mxu0 0.0
        %1787 = vmatpush1.xpose.msra.mxu0 %v1692
        %1788 = vmatprep.subr.mxu0 0.0
        %1789 = vmatpush1.xpose.msra.mxu0 %v1692
        %1790 = vmatprep.subr.mxu0 0.0
        %1791 = vmatpush1.xpose.msra.mxu0 %v1692
        %1792 = vmatprep.subr.mxu0 0.0
        %1793 = vmatpush1.xpose.msra.mxu0 %v1692
        %1794 = vmatprep.subr.mxu0 0.0
        %1795 = vmatpush1.xpose.msra.mxu0 %v1692
        %1796 = vmatprep.subr.mxu0 0.0
        %1797 = vmatpush1.xpose.msra.mxu0 %v1692
        %1798 = vmatprep.subr.mxu0 0.0
        %1799 = vmatpush1.xpose.msra.mxu0 %v1768
        %1800 = vmatprep.subr.mxu0 0.0
        %1801 = vmatpush1.xpose.msra.mxu0 %v1686
        %1802 = vmatprep.subr.mxu0 0.0
        %1803 = vmatpush2.xpose.msra.mxu0 0.0
        %1804 = vmatprep.subr.mxu0 0.0
        %1805 = vmatpush2.xpose.msra.mxu0 0.0
        %1806 = vmatprep.subr.mxu0 0.0
        %1807 = vmatpush2.xpose.msra.mxu0 0.0
        %1808 = vmatprep.subr.mxu0 0.0
        %1809 = vmatpush2.xpose.msra.mxu0 0.0
        %1810 = vmatprep.subr.mxu0 0.0
        %1811 = vmatpush2.xpose.msra.mxu0 0.0
        %1812 = vmatprep.subr.mxu0 0.0
        %1813 = vmatpush2.xpose.msra.mxu0 0.0
        %1814 = vmatprep.subr.mxu0 0.0
        %1815 = vmatpush2.xpose.msra.mxu0 0.0
        %1816 = vmatprep.subr.mxu0 0.0
        %1817 = vmatpush2.xpose.msra.mxu0 0.0
        %1818 = vmatprep.subr.mxu0 0.0
        %1819 = vmatpush2.xpose.msra.mxu0 0.0
        %1820 = vmatprep.subr.mxu0 0.0
        %1821 = vmatpush2.xpose.msra.mxu0 0.0
        %1822 = vmatprep.subr.mxu0 0.0
        %1823 = vmatpush2.xpose.msra.mxu0 0.0
        %1824 = vmatprep.subr.mxu0 0.0
        %1825 = vmatpush2.xpose.msra.mxu0 0.0
        %1826 = vmatprep.subr.mxu0 0.0
        %1827 = vmatpush2.xpose.msra.mxu0 0.0
        %1828 = vmatprep.subr.mxu0 0.0
        %1829 = vmatpush2.xpose.msra.mxu0 0.0
        %1830 = vmatprep.subr.mxu0 0.0
        %1831 = vmatpush2.xpose.msra.mxu0 0.0
        %1832 = vmatprep.subr.mxu0 0.0
        %1833 = vmatpush2.xpose.msra.mxu0 0.0
        %1834 = vmatprep.mubr.f32.mxu0 0.0
        %1835 = vmatmul.mubr.f32.gmra.mxu0 %v1765
        %v1836 = vpop.f32.mrf.mxu0
        %v1837 = vadd.f32 0.0, %v1836
        %v1838 = vpop.f32.mrf.mxu0
        %1839 = vdwg.mxu0
        %v1841 = vsel %vm727, %v1680, 0
        %v1844 = vsel %vm727, %v1082, 0
        %1846 = vmatprep.subr.mxu0 0.0
        %1847 = vmatpush1.xpose.msra.mxu0 %v1692
        %1848 = vmatprep.subr.mxu0 0.0
        %1849 = vmatpush1.xpose.msra.mxu0 %v1692
        %1850 = vmatprep.subr.mxu0 0.0
        %1851 = vmatpush1.xpose.msra.mxu0 %v1692
        %1852 = vmatprep.subr.mxu0 0.0
        %1853 = vmatpush1.xpose.msra.mxu0 %v1692
        %1854 = vmatprep.subr.mxu0 0.0
        %1855 = vmatpush1.xpose.msra.mxu0 %v1692
        %1856 = vmatprep.subr.mxu0 0.0
        %1857 = vmatpush1.xpose.msra.mxu0 %v1692
        %1858 = vmatprep.subr.mxu0 0.0
        %1859 = vmatpush1.xpose.msra.mxu0 %v1692
        %1860 = vmatprep.subr.mxu0 0.0
        %1861 = vmatpush1.xpose.msra.mxu0 %v1692
        %1862 = vmatprep.subr.mxu0 0.0
        %1863 = vmatpush1.xpose.msra.mxu0 %v1692
        %1864 = vmatprep.subr.mxu0 0.0
        %1865 = vmatpush1.xpose.msra.mxu0 %v1692
        %1866 = vmatprep.subr.mxu0 0.0
        %1867 = vmatpush1.xpose.msra.mxu0 %v1692
        %1868 = vmatprep.subr.mxu0 0.0
        %1869 = vmatpush1.xpose.msra.mxu0 %v1692
        %1870 = vmatprep.subr.mxu0 0.0
        %1871 = vmatpush1.xpose.msra.mxu0 %v1692
        %1872 = vmatprep.subr.mxu0 0.0
        %1873 = vmatpush1.xpose.msra.mxu0 %v1692
        %1874 = vmatprep.subr.mxu0 0.0
        %1875 = vmatpush1.xpose.msra.mxu0 %v1844
        %1876 = vmatprep.subr.mxu0 0.0
        %1877 = vmatpush1.xpose.msra.mxu0 %v1686
        %1878 = vmatprep.subr.mxu0 0.0
        %1879 = vmatpush2.xpose.msra.mxu0 0.0
        %1880 = vmatprep.subr.mxu0 0.0
        %1881 = vmatpush2.xpose.msra.mxu0 0.0
        %1882 = vmatprep.subr.mxu0 0.0
        %1883 = vmatpush2.xpose.msra.mxu0 0.0
        %1884 = vmatprep.subr.mxu0 0.0
        %1885 = vmatpush2.xpose.msra.mxu0 0.0
        %1886 = vmatprep.subr.mxu0 0.0
        %1887 = vmatpush2.xpose.msra.mxu0 0.0
        %1888 = vmatprep.subr.mxu0 0.0
        %1889 = vmatpush2.xpose.msra.mxu0 0.0
        %1890 = vmatprep.subr.mxu0 0.0
        %1891 = vmatpush2.xpose.msra.mxu0 0.0
        %1892 = vmatprep.subr.mxu0 0.0
        %1893 = vmatpush2.xpose.msra.mxu0 0.0
        %1894 = vmatprep.subr.mxu0 0.0
        %1895 = vmatpush2.xpose.msra.mxu0 0.0
        %1896 = vmatprep.subr.mxu0 0.0
        %1897 = vmatpush2.xpose.msra.mxu0 0.0
        %1898 = vmatprep.subr.mxu0 0.0
        %1899 = vmatpush2.xpose.msra.mxu0 0.0
        %1900 = vmatprep.subr.mxu0 0.0
        %1901 = vmatpush2.xpose.msra.mxu0 0.0
        %1902 = vmatprep.subr.mxu0 0.0
        %1903 = vmatpush2.xpose.msra.mxu0 0.0
        %1904 = vmatprep.subr.mxu0 0.0
        %1905 = vmatpush2.xpose.msra.mxu0 0.0
        %1906 = vmatprep.subr.mxu0 0.0
        %1907 = vmatpush2.xpose.msra.mxu0 0.0
        %1908 = vmatprep.subr.mxu0 0.0
        %1909 = vmatpush2.xpose.msra.mxu0 0.0
        %1910 = vmatprep.mubr.f32.mxu0 0.0
        %1911 = vmatmul.mubr.f32.gmra.mxu0 %v1841
        %v1912 = vpop.f32.mrf.mxu0
        %v1913 = vadd.f32 0.0, %v1912
        %v1914 = vpop.f32.mrf.mxu0
        %1915 = vdwg.mxu0
        %v1917 = vsel %vm727, %v1681, 0
        %v1920 = vsel %vm727, %v1083, 0
        %1922 = vmatprep.subr.mxu0 0.0
        %1923 = vmatpush1.xpose.msra.mxu0 %v1692
        %1924 = vmatprep.subr.mxu0 0.0
        %1925 = vmatpush1.xpose.msra.mxu0 %v1692
        %1926 = vmatprep.subr.mxu0 0.0
        %1927 = vmatpush1.xpose.msra.mxu0 %v1692
        %1928 = vmatprep.subr.mxu0 0.0
        %1929 = vmatpush1.xpose.msra.mxu0 %v1692
        %1930 = vmatprep.subr.mxu0 0.0
        %1931 = vmatpush1.xpose.msra.mxu0 %v1692
        %1932 = vmatprep.subr.mxu0 0.0
        %1933 = vmatpush1.xpose.msra.mxu0 %v1692
        %1934 = vmatprep.subr.mxu0 0.0
        %1935 = vmatpush1.xpose.msra.mxu0 %v1692
        %1936 = vmatprep.subr.mxu0 0.0
        %1937 = vmatpush1.xpose.msra.mxu0 %v1692
        %1938 = vmatprep.subr.mxu0 0.0
        %1939 = vmatpush1.xpose.msra.mxu0 %v1692
        %1940 = vmatprep.subr.mxu0 0.0
        %1941 = vmatpush1.xpose.msra.mxu0 %v1692
        %1942 = vmatprep.subr.mxu0 0.0
        %1943 = vmatpush1.xpose.msra.mxu0 %v1692
        %1944 = vmatprep.subr.mxu0 0.0
        %1945 = vmatpush1.xpose.msra.mxu0 %v1692
        %1946 = vmatprep.subr.mxu0 0.0
        %1947 = vmatpush1.xpose.msra.mxu0 %v1692
        %1948 = vmatprep.subr.mxu0 0.0
        %1949 = vmatpush1.xpose.msra.mxu0 %v1692
        %1950 = vmatprep.subr.mxu0 0.0
        %1951 = vmatpush1.xpose.msra.mxu0 %v1920
        %1952 = vmatprep.subr.mxu0 0.0
        %1953 = vmatpush1.xpose.msra.mxu0 %v1686
        %1954 = vmatprep.subr.mxu0 0.0
        %1955 = vmatpush2.xpose.msra.mxu0 0.0
        %1956 = vmatprep.subr.mxu0 0.0
        %1957 = vmatpush2.xpose.msra.mxu0 0.0
        %1958 = vmatprep.subr.mxu0 0.0
        %1959 = vmatpush2.xpose.msra.mxu0 0.0
        %1960 = vmatprep.subr.mxu0 0.0
        %1961 = vmatpush2.xpose.msra.mxu0 0.0
        %1962 = vmatprep.subr.mxu0 0.0
        %1963 = vmatpush2.xpose.msra.mxu0 0.0
        %1964 = vmatprep.subr.mxu0 0.0
        %1965 = vmatpush2.xpose.msra.mxu0 0.0
        %1966 = vmatprep.subr.mxu0 0.0
        %1967 = vmatpush2.xpose.msra.mxu0 0.0
        %1968 = vmatprep.subr.mxu0 0.0
        %1969 = vmatpush2.xpose.msra.mxu0 0.0
        %1970 = vmatprep.subr.mxu0 0.0
        %1971 = vmatpush2.xpose.msra.mxu0 0.0
        %1972 = vmatprep.subr.mxu0 0.0
        %1973 = vmatpush2.xpose.msra.mxu0 0.0
        %1974 = vmatprep.subr.mxu0 0.0
        %1975 = vmatpush2.xpose.msra.mxu0 0.0
        %1976 = vmatprep.subr.mxu0 0.0
        %1977 = vmatpush2.xpose.msra.mxu0 0.0
        %1978 = vmatprep.subr.mxu0 0.0
        %1979 = vmatpush2.xpose.msra.mxu0 0.0
        %1980 = vmatprep.subr.mxu0 0.0
        %1981 = vmatpush2.xpose.msra.mxu0 0.0
        %1982 = vmatprep.subr.mxu0 0.0
        %1983 = vmatpush2.xpose.msra.mxu0 0.0
        %1984 = vmatprep.subr.mxu0 0.0
        %1985 = vmatpush2.xpose.msra.mxu0 0.0
        %1986 = vmatprep.mubr.f32.mxu0 0.0
        %1987 = vmatmul.mubr.f32.gmra.mxu0 %v1917
        %v1988 = vpop.f32.mrf.mxu0
        %v1989 = vadd.f32 0.0, %v1988
        %v1990 = vpop.f32.mrf.mxu0
        %1991 = vdwg.mxu0
        %1992 = vst [vmem:[%s211] sm:$0xff] %v1761
        %1993 = vst [vmem:[%s211 + $0x8] sm:$0xff] %v1837
        %1994 = vst [vmem:[%s211 + $0x10] sm:$0xff] %v1913
        %1995 = vst [vmem:[%s211 + $0x18] sm:$0xff] %v1989
        %vm1996 = vcmp.lt.s32.totalorder %v282, 3
        %vm1997 = vcmp.ge.s32.totalorder %v282, 8
        %vm1998 = vcmp.lt.s32.totalorder %v282, 16
        %vm1999 = vmand %vm1997, %vm1998
        %vm2000 = vmor %vm1996, %vm1999
        %v2001 = vsel %vm2000, %v1761, -1e+30
        %v2002 = vsel %vm2000, %v1837, -1e+30
        %v2003 = vsel %vm2000, %v1913, -1e+30
        %v2004 = vsel %vm2000, %v1989, -1e+30
        %2005 = vmax.xlane.f32.xlu0 %v2001
        %v2006 = vpop.xlane.xlu0 %2005
        %2007 = vmax.xlane.f32.xlu0 %v2002
        %v2008 = vpop.xlane.xlu0 %2007
        %2009 = vmax.xlane.f32.xlu0 %v2003
        %v2010 = vpop.xlane.xlu0 %2009
        %2011 = vmax.xlane.f32.xlu0 %v2004
        %v2012 = vpop.xlane.xlu0 %2011
        %v2013 = vsub.f32 %v2001, %v2006
        %v2014 = vsub.f32 %v2002, %v2008
        %v2015 = vsub.f32 %v2003, %v2010
        %v2016 = vsub.f32 %v2004, %v2012
        %v2017 = vmul.f32 %v2013, 1.442695
        %v2018 = vpow.pop %v2017
        %v2019 = vmul.f32 %v2014, 1.442695
        %v2020 = vpow.pop %v2019
        %v2021 = vmul.f32 %v2015, 1.442695
        %v2022 = vpow.pop %v2021
        %v2023 = vmul.f32 %v2016, 1.442695
        %v2024 = vpow.pop %v2023
        %2025 = vadd.xlane.f32.xlu0 %v2018
        %v2026 = vpop.xlane.xlu0 %2025
        %2027 = vadd.xlane.f32.xlu0 %v2020
        %v2028 = vpop.xlane.xlu0 %2027
        %2029 = vadd.xlane.f32.xlu0 %v2022
        %v2030 = vpop.xlane.xlu0 %2029
        %2031 = vadd.xlane.f32.xlu0 %v2024
        %v2032 = vpop.xlane.xlu0 %2031
        %v2033 = vlog2.pop %v2026
        %v2034 = vmul.f32 %v2033, 0.6931472
        %v2035 = vlog2.pop %v2028
        %v2036 = vmul.f32 %v2035, 0.6931472
        %v2037 = vlog2.pop %v2030
        %v2038 = vmul.f32 %v2037, 0.6931472
        %v2039 = vlog2.pop %v2032
        %v2040 = vmul.f32 %v2039, 0.6931472
        %v2041 = vadd.f32 %v2006, %v2034
        %v2042 = vadd.f32 %v2008, %v2036
        %v2043 = vadd.f32 %v2010, %v2038
        %v2044 = vadd.f32 %v2012, %v2040
        %vm2045 = vcmp.lt.s32.totalorder %v1084, 3
        %vm2046 = vcmp.lt.s32.totalorder %v1085, 3
        %vm2047 = vcmp.lt.s32.totalorder %v1086, 3
        %vm2048 = vcmp.lt.s32.totalorder %v1087, 3
        %v2049 = vadd.s32 %v1084, 5
        %v2050 = vadd.s32 %v1085, 5
        %v2051 = vadd.s32 %v1086, 5
        %v2052 = vadd.s32 %v1087, 5
        %v2053 = vsel %vm2045, %v1084, %v2049
        %v2054 = vsel %vm2046, %v1085, %v2050
        %v2055 = vsel %vm2047, %v1086, %v2051
        %v2056 = vsel %vm2048, %v1087, %v2052
        %2057 = vset.pattern.permute.xlu0 6
        %2058 = vperm.xlu0 %2057, %v2053
        %v2059 = vpop.permute.xlu0 %2058
        %2060 = vset.pattern.permute.xlu0 6
        %2061 = vperm.xlu0 %2060, %v2054
        %v2062 = vpop.permute.xlu0 %2061
        %2063 = vset.pattern.permute.xlu0 6
        %2064 = vperm.xlu0 %2063, %v2055
        %v2065 = vpop.permute.xlu0 %2064
        %2066 = vset.pattern.permute.xlu0 6
        %2067 = vperm.xlu0 %2066, %v2056
        %v2068 = vpop.permute.xlu0 %2067
        %vm2069 = vcmp.eq.s32.totalorder %v282, %v2059
        %vm2070 = vcmp.eq.s32.totalorder %v282, %v2062
        %vm2071 = vcmp.eq.s32.totalorder %v282, %v2065
        %vm2072 = vcmp.eq.s32.totalorder %v282, %v2068
        %v2073 = vsel %vm2069, %v2001, 0.0
        %v2074 = vsel %vm2070, %v2002, 0.0
        %v2075 = vsel %vm2071, %v2003, 0.0
        %v2076 = vsel %vm2072, %v2004, 0.0
        %2077 = vadd.xlane.f32.xlu0 %v2073
        %v2078 = vpop.xlane.xlu0 %2077
        %2079 = vadd.xlane.f32.xlu0 %v2074
        %v2080 = vpop.xlane.xlu0 %2079
        %2081 = vadd.xlane.f32.xlu0 %v2075
        %v2082 = vpop.xlane.xlu0 %2081
        %2083 = vadd.xlane.f32.xlu0 %v2076
        %v2084 = vpop.xlane.xlu0 %2083
        %vm2085 = vcmp.ne.s32.totalorder %v1084, 2
        %vm2086 = vcmp.ne.s32.totalorder %v1085, 2
        %vm2087 = vcmp.ne.s32.totalorder %v1086, 2
        %vm2088 = vcmp.ne.s32.totalorder %v1087, 2
        %v2089 = vsub.f32 %v2041, %v2078
        %v2090 = vsub.f32 %v2042, %v2080
        %v2091 = vsub.f32 %v2043, %v2082
        %v2092 = vsub.f32 %v2044, %v2084
        %v2093 = vsel %vm2085, %v2089, 0.0
        %v2094 = vsel %vm2086, %v2090, 0.0
        %v2095 = vsel %vm2087, %v2091, 0.0
        %v2096 = vsel %vm2088, %v2092, 0.0
        %2101 = vrot.lane.b32.xlu0 %v2093, 122
        %v2102 = vpop.permute.xlu0 %2101
        %2103 = vrot.lane.b32.xlu0 %v2094, 122
        %v2104 = vpop.permute.xlu0 %2103
        %2105 = vrot.lane.b32.xlu0 %v2095, 122
        %v2106 = vpop.permute.xlu0 %2105
        %2107 = vrot.lane.b32.xlu0 %v2096, 122
        %v2108 = vpop.permute.xlu0 %2107
        %vm2113 = vcmask 7168
        %v2114 = vsel %vm2113, %v2102, 0.0
        %v2115 = vsel %vm2113, %v2104, 0.0
        %v2116 = vadd.f32 %v2114, %v2115
        %v2117 = vsel %vm2113, %v2106, 0.0
        %v2118 = vadd.f32 %v2116, %v2117
        %v2119 = vsel %vm2113, %v2108, 0.0
        %v2120 = vadd.f32 %v2118, %v2119
        %2121 = vadd.xlane.f32.xlu0 %v2120
        %v2122 = vpop.xlane.xlu0 %2121
        %v2123 = vrot.slane %v2122, 4
        %v2124 = vadd.f32 %v2122, %v2123
        %v2125 = vrot.slane %v2124, 2
        %v2126 = vadd.f32 %v2124, %v2125
        %v2127 = vrot.slane %v2126, 1
        %v2128 = vadd.f32 %v2126, %v2127
        %s2129 = vtos %v2128
        %v2130 = vsel %vm2085, 1, 0
        %v2131 = vsel %vm2086, 1, 0
        %v2132 = vsel %vm2087, 1, 0
        %v2133 = vsel %vm2088, 1, 0
        %v2134 = vcvt.s32.f32 %v2130
        %v2135 = vcvt.s32.f32 %v2131
        %v2136 = vcvt.s32.f32 %v2132
        %v2137 = vcvt.s32.f32 %v2133
        %2142 = vrot.lane.b32.xlu0 %v2134, 122
        %v2143 = vpop.permute.xlu0 %2142
        %2144 = vrot.lane.b32.xlu0 %v2135, 122
        %v2145 = vpop.permute.xlu0 %2144
        %2146 = vrot.lane.b32.xlu0 %v2136, 122
        %v2147 = vpop.permute.xlu0 %2146
        %2148 = vrot.lane.b32.xlu0 %v2137, 122
        %v2149 = vpop.permute.xlu0 %2148
        %v2154 = vsel %vm2113, %v2143, 0.0
        %v2155 = vsel %vm2113, %v2145, 0.0
        %v2156 = vadd.f32 %v2154, %v2155
        %v2157 = vsel %vm2113, %v2147, 0.0
        %v2158 = vadd.f32 %v2156, %v2157
        %v2159 = vsel %vm2113, %v2149, 0.0
        %v2160 = vadd.f32 %v2158, %v2159
        %2161 = vadd.xlane.f32.xlu0 %v2160
        %v2162 = vpop.xlane.xlu0 %2161
        %v2163 = vrot.slane %v2162, 4
        %v2164 = vadd.f32 %v2162, %v2163
        %v2165 = vrot.slane %v2164, 2
        %v2166 = vadd.f32 %v2164, %v2165
        %v2167 = vrot.slane %v2166, 1
        %v2168 = vadd.f32 %v2166, %v2167
        %s2169 = vtos %v2168
        %vm2170 = vcmp.eq.f32.partialorder %v2001, %v2006
        %vm2171 = vcmp.eq.f32.partialorder %v2002, %v2008
        %vm2172 = vcmp.eq.f32.partialorder %v2003, %v2010
        %vm2173 = vcmp.eq.f32.partialorder %v2004, %v2012
        %v2174 = vsel %vm2170, %v282, 128
        %v2175 = vsel %vm2171, %v282, 128
        %v2176 = vsel %vm2172, %v282, 128
        %v2177 = vsel %vm2173, %v282, 128
        %v2178 = vand.u32 %v2174, 65535
        %v2179 = vshra.s32 %v2174, 16
        %v2180 = vcvt.s32.f32 %v2178
        %v2181 = vcvt.s32.f32 %v2179
        %2182 = vmin.xlane.f32.xlu0 %v2181
        %v2183 = vpop.xlane.xlu0 %2182
        %vm2184 = vcmp.eq.f32.partialorder %v2181, %v2183
        %v2185 = vsel %vm2184, %v2180, inf
        %2186 = vmin.xlane.f32.xlu0 %v2185
        %v2187 = vpop.xlane.xlu0 %2186
        %v2188 = vcvt.f32.s32 %v2187
        %v2189 = vcvt.f32.s32 %v2183
        %v2190 = vshll.u32 %v2189, 16
        %v2191 = vadd.s32 %v2190, %v2188
        %v2192 = vand.u32 %v2175, 65535
        %v2193 = vshra.s32 %v2175, 16
        %v2194 = vcvt.s32.f32 %v2192
        %v2195 = vcvt.s32.f32 %v2193
        %2196 = vmin.xlane.f32.xlu0 %v2195
        %v2197 = vpop.xlane.xlu0 %2196
        %vm2198 = vcmp.eq.f32.partialorder %v2195, %v2197
        %v2199 = vsel %vm2198, %v2194, inf
        %2200 = vmin.xlane.f32.xlu0 %v2199
        %v2201 = vpop.xlane.xlu0 %2200
        %v2202 = vcvt.f32.s32 %v2201
        %v2203 = vcvt.f32.s32 %v2197
        %v2204 = vshll.u32 %v2203, 16
        %v2205 = vadd.s32 %v2204, %v2202
        %v2206 = vand.u32 %v2176, 65535
        %v2207 = vshra.s32 %v2176, 16
        %v2208 = vcvt.s32.f32 %v2206
        %v2209 = vcvt.s32.f32 %v2207
        %2210 = vmin.xlane.f32.xlu0 %v2209
        %v2211 = vpop.xlane.xlu0 %2210
        %vm2212 = vcmp.eq.f32.partialorder %v2209, %v2211
        %v2213 = vsel %vm2212, %v2208, inf
        %2214 = vmin.xlane.f32.xlu0 %v2213
        %v2215 = vpop.xlane.xlu0 %2214
        %v2216 = vcvt.f32.s32 %v2215
        %v2217 = vcvt.f32.s32 %v2211
        %v2218 = vshll.u32 %v2217, 16
        %v2219 = vadd.s32 %v2218, %v2216
        %v2220 = vand.u32 %v2177, 65535
        %v2221 = vshra.s32 %v2177, 16
        %v2222 = vcvt.s32.f32 %v2220
        %v2223 = vcvt.s32.f32 %v2221
        %2224 = vmin.xlane.f32.xlu0 %v2223
        %v2225 = vpop.xlane.xlu0 %2224
        %vm2226 = vcmp.eq.f32.partialorder %v2223, %v2225
        %v2227 = vsel %vm2226, %v2222, inf
        %2228 = vmin.xlane.f32.xlu0 %v2227
        %v2229 = vpop.xlane.xlu0 %2228
        %v2230 = vcvt.f32.s32 %v2229
        %v2231 = vcvt.f32.s32 %v2225
        %v2232 = vshll.u32 %v2231, 16
        %v2233 = vadd.s32 %v2232, %v2230
        %vm2234 = vcmp.eq.s32.totalorder %v2191, %v2053
        %vm2235 = vcmp.eq.s32.totalorder %v2205, %v2054
        %vm2236 = vcmp.eq.s32.totalorder %v2219, %v2055
        %vm2237 = vcmp.eq.s32.totalorder %v2233, %v2056
        %vm2238 = vmand %vm2085, %vm2234
        %vm2239 = vmand %vm2086, %vm2235
        %vm2240 = vmand %vm2087, %vm2236
        %vm2241 = vmand %vm2088, %vm2237
        %v2242 = vsel %vm2238, 1.0, 0.0
        %v2243 = vsel %vm2239, 1.0, 0.0
        %v2244 = vsel %vm2240, 1.0, 0.0
        %v2245 = vsel %vm2241, 1.0, 0.0
        %2250 = vrot.lane.b32.xlu0 %v2242, 122
        %v2251 = vpop.permute.xlu0 %2250
        %2252 = vrot.lane.b32.xlu0 %v2243, 122
        %v2253 = vpop.permute.xlu0 %2252
        %2254 = vrot.lane.b32.xlu0 %v2244, 122
        %v2255 = vpop.permute.xlu0 %2254
        %2256 = vrot.lane.b32.xlu0 %v2245, 122
        %v2257 = vpop.permute.xlu0 %2256
        %v2262 = vsel %vm2113, %v2251, 0.0
        %v2263 = vsel %vm2113, %v2253, 0.0
        %v2264 = vadd.f32 %v2262, %v2263
        %v2265 = vsel %vm2113, %v2255, 0.0
        %v2266 = vadd.f32 %v2264, %v2265
        %v2267 = vsel %vm2113, %v2257, 0.0
        %v2268 = vadd.f32 %v2266, %v2267
        %2269 = vadd.xlane.f32.xlu0 %v2268
        %v2270 = vpop.xlane.xlu0 %2269
        %v2271 = vrot.slane %v2270, 4
        %v2272 = vadd.f32 %v2270, %v2271
        %v2273 = vrot.slane %v2272, 2
        %v2274 = vadd.f32 %v2272, %v2273
        %v2275 = vrot.slane %v2274, 1
        %v2276 = vadd.f32 %v2274, %v2275
        %s2277 = vtos %v2276
        %vm2278 = vcmp.eq.s32.totalorder %v282, 0
        %v2279 = vstv %s2129
        %v2280 = vsel %vm2278, %v2279, 0.0
        %vm2281 = vcmp.eq.s32.totalorder %v282, 1
        %v2282 = vstv %s2169
        %v2283 = vsel %vm2281, %v2282, 0.0
        %v2284 = vadd.f32 %v2280, %v2283
        %vm2285 = vcmp.eq.s32.totalorder %v282, 2
        %v2286 = vstv %s2277
        %v2287 = vsel %vm2285, %v2286, 0.0
        %v2288 = vadd.f32 %v2284, %v2287
        %2289 = vst [vmem:[%s217] sm:$0x1] %v2288
        %s2290 = sand.u32 %s103, 1
        %s2291 = scalar_lea.sflag [#allocation3], %s2290
        %s2292 = sand.u32 %s103, 1
        %s2293 = smul.addr %s2292, 32
        %s2294 = scalar_lea.vmem [#allocation2], %s2293
        %s2295 = sand.u32 %s129, 1
        %s2296 = scalar_lea.sflag [#allocation5], %s2295
        %s2297 = sand.u32 %s129, 1
        %s2298 = scalar_lea.vmem [#allocation4], %s2297
        // Predicated region
        $region33: #{tpu_custom_call.1} parent=31 // pred_check
          %p2299 = pneg %p113
        $region34: #{tpu_custom_call.1} parent=31 // pred_check_branch
          %2301 = sbr.rel (%p2299) target = $region36
        $region35: #{tpu_custom_call.1} parent=31 // pred_region
          %s2302 = smul.u32 4, %s22
          %s2304 = ssub.s32 512, 512
          %2305 = vsyncadd %s2291, %s2304
          %s2306 = smul.addr %s2302, 128
          %s2307 = scalar_lea.hbm %s3, %s2306
          %s2308 = sshll.u32 %s2294, 4
          %s2309 = int_to_ptr.vmem [resolvable:$true] %s2308
          %2314 = dma.vmem_to_hbm [thread:$0]  %s2309, 512, %s2307, %s2291, 128, 128, 8
        $region36: #{tpu_custom_call.1} parent=31 // pred_fallthru
          _
        // Predicated region
        $region37: #{tpu_custom_call.1} parent=31 // pred_check
          %p2315 = pneg %p139
        $region38: #{tpu_custom_call.1} parent=31 // pred_check_branch
          %2317 = sbr.rel (%p2315) target = $region40
        $region39: #{tpu_custom_call.1} parent=31 // pred_region
          %s2319 = ssub.s32 16, 16
          %2320 = vsyncadd %s2296, %s2319
          %s2321 = smul.addr %s22, 16
          %s2322 = scalar_lea.hbm %s4, %s2321
          %s2324 = sshll.u32 %s2298, 4
          %s2325 = int_to_ptr.vmem [resolvable:$true] %s2324
          %2327 = dma.vmem_to_hbm [thread:$0]  %s2325, 16, %s2322, %s2296
        $region40: #{tpu_custom_call.1} parent=31 // pred_fallthru
          _
      $region32: #{tpu_custom_call.1} parent=5 // pred_fallthru
        _
      %p2328 = scmp.le.s32.totalorder 2, %s17
      // Predicated region
      $region41: #{tpu_custom_call.1} parent=5 // pred_check
        %p2329 = pneg %p2328
      $region42: #{tpu_custom_call.1} parent=5 // pred_check_branch
        %2331 = sbr.rel (%p2329) target = $region44
      $region43: #{tpu_custom_call.1} parent=5 // pred_region
        %s2332 = ssub.s32 %s17, 2
        // Predicated region
        $region45: #{tpu_custom_call.1} parent=43 // pred_check
          %p2333 = pneg %p119
        $region46: #{tpu_custom_call.1} parent=43 // pred_check_branch
          %2335 = sbr.rel (%p2333) target = $region48
        $region47: #{tpu_custom_call.1} parent=43 // pred_region
          %s2336 = sand.u32 %s104, 1
          %s2337 = scalar_lea.sflag [#allocation3], %s2336
          %s2338 = sand.u32 %s104, 1
          %s2339 = smul.addr %s2338, 32
          %s2340 = scalar_lea.vmem [#allocation2], %s2339
          %2341 = dma.done %s2337, 512
        $region48: #{tpu_custom_call.1} parent=43 // pred_fallthru
          _
        // Predicated region
        $region49: #{tpu_custom_call.1} parent=43 // pred_check
          %p2342 = pneg %p145
        $region50: #{tpu_custom_call.1} parent=43 // pred_check_branch
          %2344 = sbr.rel (%p2342) target = $region52
        $region51: #{tpu_custom_call.1} parent=43 // pred_region
          %s2345 = sand.u32 %s130, 1
          %s2346 = scalar_lea.sflag [#allocation5], %s2345
          %s2347 = sand.u32 %s130, 1
          %s2348 = scalar_lea.vmem [#allocation4], %s2347
          %2349 = dma.done %s2346, 16
        $region52: #{tpu_custom_call.1} parent=43 // pred_fallthru
          _
      $region44: #{tpu_custom_call.1} parent=5 // pred_fallthru
        _
    $region6: #{tpu_custom_call.1} parent=1 // loop_footer
      %s21 = sadd.s32 1, %s17
    $region7: #{tpu_custom_call.1} parent=1 // loop_footer_branch
      %16 = sbr.rel target = $region3
    $region8: #{tpu_custom_call.1} parent=1 // loop_exit
      _
    %2350 = vsyncpa [#allocation3], 1
    %s2351 = scalar_lea.sflag [#allocation3], 1
    %2352 = vsyncpa %s2351, 1
    %2353 = vsyncpa [#allocation5], 1
    %s2354 = scalar_lea.sflag [#allocation5], 1
    %2355 = vsyncpa %s2354, 1

</llo_original>
